<compile_context>
chip_gen: v6e
topology: v6e:2x2x1
jax: 0.10.0
libtpu: 0.0.40
codegen_flags: <defaults>
</compile_context>

<pallas_src>
import functools

import jax
import jax.numpy as jnp
from jax import lax
from jax.experimental import pallas as pl
from jax.experimental.pallas import tpu as pltpu


# ------------------------------ Pallas kernel ------------------------------ #
def _cbam_kernel(x_ref, w1t_ref, w2_ref, w9_ref, mask_ref, out_ref, *,
                 H, W, c_chunk):
    # x_ref   : [bB, C, S]  bB batch elements, S = D*H*W (lane-dense)
    # w1t_ref : [C, Ch]     fc1.weight.T   (Linear C -> Ch, no bias)
    # w2_ref  : [C, Ch]     fc2.weight     (Linear Ch -> C, no bias)
    # w9_ref  : [9, 6]      conv weight, [kh*3+kw, ci*3+kd]
    # mask_ref: [9, S]      precomputed H/W validity masks (f32) per (kh,kw)
    bB, C, S = x_ref.shape
    HW = H * W
    P = HW + W + 1                 # flat zero-pad; covers max |dd*HW+dh*W+dw|
    Sp = S + 2 * (W + 1)           # extended domain for the +/-(W+1) sub-shifts

    w1t = w1t_ref[...].astype(jnp.float32)     # [C, Ch]
    w2 = w2_ref[...].astype(jnp.float32)       # [C, Ch]
    w9 = w9_ref[...].astype(jnp.float32)       # [9, 6]
    masks = mask_ref[...]                      # [9, S] f32

    chunks = [(c0, min(c_chunk, C - c0)) for c0 in range(0, C, c_chunk)]

    def shared_mlp(v):                         # [C,1] -> [C,1]
        h = jnp.sum(w1t * v, axis=0, keepdims=True)       # [1, Ch]
        h = jnp.where(h > 0.0, h, jnp.exp(h) - 1.0)       # ELU(alpha=1)
        return jnp.sum(w2 * h, axis=1, keepdims=True)     # [C, 1]

    for b in range(bB):
        # -------------- channel attention: global avg / max pool ---------- #
        sums, maxs = [], []
        for c0, ck in chunks:
            blk = x_ref[b, c0:c0 + ck, :].astype(jnp.float32)
            sums.append(jnp.sum(blk, axis=1, keepdims=True))
            maxs.append(jnp.max(blk, axis=1, keepdims=True))
        avg = jnp.concatenate(sums, axis=0) * (1.0 / S)    # [C, 1]
        mx = jnp.concatenate(maxs, axis=0)                 # [C, 1]

        gate = shared_mlp(avg) + shared_mlp(mx)
        gate = 1.0 / (1.0 + jnp.exp(-gate))                # sigmoid, [C, 1]

        # -------- spatial stats (max / mean over channels of x * gate) ---- #
        ch_mx, ch_sum = None, None
        for c0, ck in chunks:
            blk = (x_ref[b, c0:c0 + ck, :].astype(jnp.float32)
                   * gate[c0:c0 + ck, :])
            bmx = jnp.max(blk, axis=0, keepdims=True)
            bsm = jnp.sum(blk, axis=0, keepdims=True)
            ch_mx = bmx if ch_mx is None else jnp.maximum(ch_mx, bmx)
            ch_sum = bsm if ch_sum is None else ch_sum + bsm
        ch_avg = ch_sum * (1.0 / C)
        # torch.cat([max, avg]) -> conv in-channel 0 = max, 1 = avg
        ch_stats = jnp.concatenate([ch_mx, ch_avg], axis=0)     # [2, S]

        # -------------- 3x3x3 conv on the flat axis, factored -------------- #
        # d boundary handled exactly by the zero pad; h/w wrap handled by the
        # precomputed masks.
        zpad = jnp.zeros((2, P), jnp.float32)
        padded = jnp.concatenate([zpad, ch_stats, zpad], axis=1)  # [2, S+2P]

        rows = []
        for ci in range(2):
            for kd in range(3):
                start = P + (kd - 1) * HW - (W + 1)               # static
                rows.append(padded[ci:ci + 1, start:start + Sp])
        stack = jnp.concatenate(rows, axis=0)                     # [6, Sp]

        # 9 per-(kh,kw) weighted sums over (ci,kd): 6 well-packed FMAs.
        q_all = jnp.zeros((9, Sp), jnp.float32)
        for q in range(6):
            q_all = q_all + w9[:, q:q + 1] * stack[q:q + 1, :]

        # apply the 9 small +/-(W+1) shifts, mask, and reduce.
        shifted = []
        for kh in range(3):
            for kw in range(3):
                r = 3 * kh + kw
                off = (W + 1) + (kh - 1) * W + (kw - 1)           # static
                shifted.append(q_all[r:r + 1, off:off + S])
        shifted = jnp.concatenate(shifted, axis=0)                # [9, S]

        att = jnp.sum(shifted * masks, axis=0, keepdims=True)     # [1, S]
        att = 1.0 / (1.0 + jnp.exp(-att))                         # sigmoid

        # -------------- fused final store: x * gate * att ------------------ #
        for c0, ck in chunks:
            blk = x_ref[b, c0:c0 + ck, :].astype(jnp.float32)
            out_ref[b, c0:c0 + ck, :] = (
                blk * gate[c0:c0 + ck, :] * att).astype(out_ref.dtype)


# --------------------------------- wrapper --------------------------------- #
def cbam3d_pallas(x, w_fc1, w_fc2, w_conv):
    """
    x      : [B, C, D, H, W]      (NCDHW, like PyTorch)
    w_fc1  : [C//r, C]            nn.Linear(C, C//r, bias=False).weight
    w_fc2  : [C, C//r]            nn.Linear(C//r, C, bias=False).weight
    w_conv : [1, 2, 3, 3, 3]      nn.Conv3d(2, 1, 3, padding=1, bias=False).weight
    returns: [B, C, D, H, W]
    """
    B, C, D, H, W = x.shape
    Ch = w_fc1.shape[0]
    S = D * H * W
    HW = H * W
    itemsize = jnp.dtype(x.dtype).itemsize

    x_flat = x.reshape(B, C, S)                    # metadata-only reshape
    w1t = jnp.transpose(w_fc1)                     # [C, Ch]
    w2 = w_fc2                                     # [C, Ch]
    # [kh*3+kw, ci*3+kd]
    w9 = jnp.transpose(w_conv[0], (2, 3, 0, 1)).reshape(9, 6)

    # Host-precomputed H/W boundary masks for the 9 (kh, kw) taps.
    s_idx = jnp.arange(S)
    wcoord = s_idx % W
    hcoord = (s_idx // W) % H
    mlist = []
    for kh in range(3):
        for kw in range(3):
            dh, dw = kh - 1, kw - 1
            mlist.append((hcoord + dh >= 0) & (hcoord + dh < H)
                         & (wcoord + dw >= 0) & (wcoord + dw < W))
    masks = jnp.stack(mlist, axis=0).astype(jnp.float32)      # [9, S]

    # Block several batch elements per grid step when one [C,S] block is tiny,
    # to amortize per-step pipeline / setup overhead.
    per_elem = C * S * itemsize
    bB = 1
    for cand in range(min(B, 8), 0, -1):
        if B % cand == 0 and cand * per_elem <= (1 << 20):
            bB = cand
            break

    # Channel chunking so no full [C,S] f32 intermediate is ever materialized.
    c_chunk = max(1, min(C, (4 << 20) // (S * 4)))
    if c_chunk >= 8:
        c_chunk = (c_chunk // 8) * 8
    c_chunk = min(c_chunk, C)

    # Scoped-VMEM budget: double-buffered in/out blocks + f32 intermediates,
    # with headroom; clamped to 64 MiB so it is valid on v7x too.
    est = 4 * bB * C * S * itemsize                # in + out, double-buffered
    est += 2 * 9 * S * 4                           # masks
    est += 32 * (S + 2 * (HW + W + 1)) * 4         # spatial-attn intermediates
    est += 8 * c_chunk * S * 4                     # chunk temporaries
    vmem_limit = int(min(max(2 * est, 32 << 20), 64 << 20))

    kernel = functools.partial(_cbam_kernel, H=H, W=W, c_chunk=c_chunk)

    out_flat = pl.pallas_call(
        kernel,
        out_shape=jax.ShapeDtypeStruct((B, C, S), x.dtype),
        grid=(B // bB,),
        in_specs=[
            pl.BlockSpec((bB, C, S), lambda i: (i, 0, 0)),   # x (per-step)
            pl.BlockSpec((C, Ch), lambda i: (0, 0)),         # fc1.T
            pl.BlockSpec((C, Ch), lambda i: (0, 0)),         # fc2
            pl.BlockSpec((9, 6), lambda i: (0, 0)),          # conv weights
            pl.BlockSpec((9, S), lambda i: (0, 0)),          # h/w masks
        ],
        out_specs=pl.BlockSpec((bB, C, S), lambda i: (i, 0, 0)),
        compiler_params=pltpu.CompilerParams(
            dimension_semantics=("parallel",),
            vmem_limit_bytes=vmem_limit),
    )(x_flat, w1t, w2, w9, masks)

    return out_flat.reshape(B, C, D, H, W)


# ----------------------------- reference (JAX) ------------------------------ #
def cbam3d_ref(x, w_fc1, w_fc2, w_conv):
    avg = jnp.mean(x, axis=(2, 3, 4))               # [B, C]
    mx = jnp.max(x, axis=(2, 3, 4))                 # [B, C]

    def shared_mlp(v):
        return jax.nn.elu(v @ w_fc1.T) @ w_fc2.T

    gate = jax.nn.sigmoid(shared_mlp(avg) + shared_mlp(mx))
    x_ca = x * gate[:, :, None, None, None]

    ch_max = jnp.max(x_ca, axis=1, keepdims=True)
    ch_avg = jnp.mean(x_ca, axis=1, keepdims=True)
    comb = jnp.concatenate([ch_max, ch_avg], axis=1)            # [B,2,D,H,W]
    dn = lax.conv_dimension_numbers(comb.shape, w_conv.shape,
                                    ("NCDHW", "OIDHW", "NCDHW"))
    att = lax.conv_general_dilated(comb, w_conv, (1, 1, 1),
                                   ((1, 1), (1, 1), (1, 1)),
                                   dimension_numbers=dn)
    att = jax.nn.sigmoid(att)
    return x_ca * att


if __name__ == "__main__":
    # Small shapes consistent with the module: batch=2, in_channels=32
    # (reduction_ratio=16 -> hidden=2), non-cubic 4x8x16 volume.
    B, C, r = 2, 32, 16
    D, H, W = 4, 8, 16
    Ch = C // r

    key = jax.random.PRNGKey(0)
    kx, k1, k2, kc = jax.random.split(key, 4)
    x = jax.random.normal(kx, (B, C, D, H, W), dtype=jnp.float32)
    w_fc1 = jax.random.normal(k1, (Ch, C), dtype=jnp.float32) * 0.2
    w_fc2 = jax.random.normal(k2, (C, Ch), dtype=jnp.float32) * 0.2
    w_conv = jax.random.normal(kc, (1, 2, 3, 3, 3), dtype=jnp.float32) * 0.2

    out = jax.block_until_ready(cbam3d_pallas(x, w_fc1, w_fc2, w_conv))
    ref = jax.block_until_ready(cbam3d_ref(x, w_fc1, w_fc2, w_conv))

    assert out.shape == (B, C, D, H, W), out.shape
    max_err = float(jnp.max(jnp.abs(out - ref)))
    assert jnp.allclose(out, ref, rtol=1e-4, atol=1e-4), max_err

    print("KERNEL_OK")
</pallas_src>

<mosaic_0001>
module attributes {stable_mosaic.version = 11 : i64} {
  func.func @_cbam_kernel(%arg0: i32, %arg1: memref<2x32x512xf32, #tpu.memory_space<vmem>>, %arg2: memref<32x2xf32, #tpu.memory_space<vmem>>, %arg3: memref<32x2xf32, #tpu.memory_space<vmem>>, %arg4: memref<9x6xf32, #tpu.memory_space<vmem>>, %arg5: memref<9x512xf32, #tpu.memory_space<vmem>>, %arg6: memref<2x32x512xf32, #tpu.memory_space<vmem>>) attributes {dimension_semantics = [#tpu.dimension_semantics<parallel>], iteration_bounds = array<i64: 1>, scalar_prefetch = 0 : i64, scratch_operands = 0 : i64, tpu.core_type = #tpu.core_type<tc>, window_params = [{transform_indices = @transform_0, window_bounds = array<i64: 2, 32, 512>}, {pipeline_mode = #tpu.pipeline_mode<synchronous>, transform_indices = @transform_1, window_bounds = array<i64: 32, 2>}, {pipeline_mode = #tpu.pipeline_mode<synchronous>, transform_indices = @transform_2, window_bounds = array<i64: 32, 2>}, {pipeline_mode = #tpu.pipeline_mode<synchronous>, transform_indices = @transform_3, window_bounds = array<i64: 9, 6>}, {pipeline_mode = #tpu.pipeline_mode<synchronous>, transform_indices = @transform_4, window_bounds = array<i64: 9, 512>}, {transform_indices = @transform_5, window_bounds = array<i64: 2, 32, 512>}]} {
    %c0 = arith.constant 0 : index
    %c0_0 = arith.constant 0 : index
    %0 = vector.load %arg2[%c0, %c0_0] : memref<32x2xf32, #tpu.memory_space<vmem>>, vector<32x2xf32>
    %c0_1 = arith.constant 0 : index
    %c0_2 = arith.constant 0 : index
    %1 = vector.load %arg3[%c0_1, %c0_2] : memref<32x2xf32, #tpu.memory_space<vmem>>, vector<32x2xf32>
    %c0_3 = arith.constant 0 : index
    %c0_4 = arith.constant 0 : index
    %2 = vector.load %arg4[%c0_3, %c0_4] : memref<9x6xf32, #tpu.memory_space<vmem>>, vector<9x6xf32>
    %c0_5 = arith.constant 0 : index
    %c0_6 = arith.constant 0 : index
    %3 = vector.load %arg5[%c0_5, %c0_6] : memref<9x512xf32, #tpu.memory_space<vmem>>, vector<9x512xf32>
    %c0_7 = arith.constant 0 : index
    %c0_8 = arith.constant 0 : index
    %c0_9 = arith.constant 0 : index
    %4 = vector.load %arg1[%c0_7, %c0_8, %c0_9] : memref<2x32x512xf32, #tpu.memory_space<vmem>>, vector<1x32x512xf32>
    %5 = vector.shape_cast %4 : vector<1x32x512xf32> to vector<32x512xf32>
    %cst = arith.constant dense<0.000000e+00> : vector<32xf32>
    %6 = vector.multi_reduction <add>, %5, %cst [1] : vector<32x512xf32> to vector<32xf32>
    %7 = vector.shape_cast %6 : vector<32xf32> to vector<32x1xf32>
    %cst_10 = arith.constant dense<0xFF800000> : vector<32xf32>
    %8 = vector.multi_reduction <maximumf>, %5, %cst_10 [1] : vector<32x512xf32> to vector<32xf32>
    %9 = vector.shape_cast %8 : vector<32xf32> to vector<32x1xf32>
    %cst_11 = arith.constant 0.001953125 : f32
    %10 = vector.broadcast %cst_11 : f32 to vector<32x1xf32>
    %11 = arith.mulf %7, %10 : vector<32x1xf32>
    %12 = vector.broadcast %11 : vector<32x1xf32> to vector<32x2xf32>
    %13 = arith.mulf %0, %12 : vector<32x2xf32>
    %cst_12 = arith.constant dense<0.000000e+00> : vector<2xf32>
    %14 = vector.multi_reduction <add>, %13, %cst_12 [0] : vector<32x2xf32> to vector<2xf32>
    %15 = vector.shape_cast %14 : vector<2xf32> to vector<1x2xf32>
    %cst_13 = arith.constant 0.000000e+00 : f32
    %16 = vector.broadcast %cst_13 : f32 to vector<1x2xf32>
    %17 = arith.cmpf ogt, %15, %16 : vector<1x2xf32>
    %18 = math.exp %15 : vector<1x2xf32>
    %cst_14 = arith.constant 1.000000e+00 : f32
    %19 = vector.broadcast %cst_14 : f32 to vector<1x2xf32>
    %20 = arith.subf %18, %19 : vector<1x2xf32>
    %21 = arith.select %17, %15, %20 : vector<1x2xi1>, vector<1x2xf32>
    %22 = vector.broadcast %21 : vector<1x2xf32> to vector<32x2xf32>
    %23 = arith.mulf %1, %22 : vector<32x2xf32>
    %cst_15 = arith.constant dense<0.000000e+00> : vector<32xf32>
    %24 = vector.multi_reduction <add>, %23, %cst_15 [1] : vector<32x2xf32> to vector<32xf32>
    %25 = vector.shape_cast %24 : vector<32xf32> to vector<32x1xf32>
    %26 = vector.broadcast %9 : vector<32x1xf32> to vector<32x2xf32>
    %27 = arith.mulf %0, %26 : vector<32x2xf32>
    %cst_16 = arith.constant dense<0.000000e+00> : vector<2xf32>
    %28 = vector.multi_reduction <add>, %27, %cst_16 [0] : vector<32x2xf32> to vector<2xf32>
    %29 = vector.shape_cast %28 : vector<2xf32> to vector<1x2xf32>
    %cst_17 = arith.constant 0.000000e+00 : f32
    %30 = vector.broadcast %cst_17 : f32 to vector<1x2xf32>
    %31 = arith.cmpf ogt, %29, %30 : vector<1x2xf32>
    %32 = math.exp %29 : vector<1x2xf32>
    %cst_18 = arith.constant 1.000000e+00 : f32
    %33 = vector.broadcast %cst_18 : f32 to vector<1x2xf32>
    %34 = arith.subf %32, %33 : vector<1x2xf32>
    %35 = arith.select %31, %29, %34 : vector<1x2xi1>, vector<1x2xf32>
    %36 = vector.broadcast %35 : vector<1x2xf32> to vector<32x2xf32>
    %37 = arith.mulf %1, %36 : vector<32x2xf32>
    %cst_19 = arith.constant dense<0.000000e+00> : vector<32xf32>
    %38 = vector.multi_reduction <add>, %37, %cst_19 [1] : vector<32x2xf32> to vector<32xf32>
    %39 = vector.shape_cast %38 : vector<32xf32> to vector<32x1xf32>
    %40 = arith.addf %25, %39 : vector<32x1xf32>
    %cst_20 = arith.constant 0.000000e+00 : f32
    %41 = vector.broadcast %cst_20 : f32 to vector<32x1xf32>
    %42 = arith.subf %41, %40 : vector<32x1xf32>
    %43 = math.exp %42 : vector<32x1xf32>
    %cst_21 = arith.constant 1.000000e+00 : f32
    %44 = vector.broadcast %cst_21 : f32 to vector<32x1xf32>
    %45 = arith.addf %44, %43 : vector<32x1xf32>
    %cst_22 = arith.constant 1.000000e+00 : f32
    %46 = vector.broadcast %cst_22 : f32 to vector<32x1xf32>
    %47 = arith.divf %46, %45 : vector<32x1xf32>
    %c0_23 = arith.constant 0 : index
    %c0_24 = arith.constant 0 : index
    %c0_25 = arith.constant 0 : index
    %48 = vector.load %arg1[%c0_23, %c0_24, %c0_25] : memref<2x32x512xf32, #tpu.memory_space<vmem>>, vector<1x32x512xf32>
    %49 = vector.shape_cast %48 : vector<1x32x512xf32> to vector<32x512xf32>
    %50 = vector.broadcast %47 : vector<32x1xf32> to vector<32x512xf32>
    %51 = arith.mulf %49, %50 : vector<32x512xf32>
    %cst_26 = arith.constant dense<0xFF800000> : vector<512xf32>
    %52 = vector.multi_reduction <maximumf>, %51, %cst_26 [0] : vector<32x512xf32> to vector<512xf32>
    %53 = vector.shape_cast %52 : vector<512xf32> to vector<1x512xf32>
    %cst_27 = arith.constant dense<0.000000e+00> : vector<512xf32>
    %54 = vector.multi_reduction <add>, %51, %cst_27 [0] : vector<32x512xf32> to vector<512xf32>
    %55 = vector.shape_cast %54 : vector<512xf32> to vector<1x512xf32>
    %cst_28 = arith.constant 3.125000e-02 : f32
    %56 = vector.broadcast %cst_28 : f32 to vector<1x512xf32>
    %57 = arith.mulf %55, %56 : vector<1x512xf32>
    %58 = tpu.concatenate %53, %57 in 0 : vector<1x512xf32>, vector<1x512xf32> -> vector<2x512xf32>
    %cst_29 = arith.constant 0.000000e+00 : f32
    %59 = vector.broadcast %cst_29 : f32 to vector<2x145xf32>
    %60 = tpu.concatenate %59, %58, %59 in 1 : vector<2x145xf32>, vector<2x512xf32>, vector<2x145xf32> -> vector<2x802xf32>
    %61 = vector.extract_strided_slice %60 {offsets = [0, 0], sizes = [1, 546], strides = [1, 1]} : vector<2x802xf32> to vector<1x546xf32>
    %62 = vector.extract_strided_slice %60 {offsets = [0, 128], sizes = [1, 546], strides = [1, 1]} : vector<2x802xf32> to vector<1x546xf32>
    %63 = vector.extract_strided_slice %60 {offsets = [0, 256], sizes = [1, 546], strides = [1, 1]} : vector<2x802xf32> to vector<1x546xf32>
    %64 = vector.extract_strided_slice %60 {offsets = [1, 0], sizes = [1, 546], strides = [1, 1]} : vector<2x802xf32> to vector<1x546xf32>
    %65 = vector.extract_strided_slice %60 {offsets = [1, 128], sizes = [1, 546], strides = [1, 1]} : vector<2x802xf32> to vector<1x546xf32>
    %66 = vector.extract_strided_slice %60 {offsets = [1, 256], sizes = [1, 546], strides = [1, 1]} : vector<2x802xf32> to vector<1x546xf32>
    %67 = tpu.concatenate %61, %62, %63, %64, %65, %66 in 0 : vector<1x546xf32>, vector<1x546xf32>, vector<1x546xf32>, vector<1x546xf32>, vector<1x546xf32>, vector<1x546xf32> -> vector<6x546xf32>
    %cst_30 = arith.constant 0.000000e+00 : f32
    %68 = vector.broadcast %cst_30 : f32 to vector<9x546xf32>
    %69 = vector.extract_strided_slice %2 {offsets = [0, 0], sizes = [9, 1], strides = [1, 1]} : vector<9x6xf32> to vector<9x1xf32>
    %70 = vector.extract_strided_slice %67 {offsets = [0, 0], sizes = [1, 546], strides = [1, 1]} : vector<6x546xf32> to vector<1x546xf32>
    %71 = vector.broadcast %69 : vector<9x1xf32> to vector<9x546xf32>
    %72 = vector.broadcast %70 : vector<1x546xf32> to vector<9x546xf32>
    %73 = arith.mulf %71, %72 : vector<9x546xf32>
    %74 = arith.addf %68, %73 : vector<9x546xf32>
    %75 = vector.extract_strided_slice %2 {offsets = [0, 1], sizes = [9, 1], strides = [1, 1]} : vector<9x6xf32> to vector<9x1xf32>
    %76 = vector.extract_strided_slice %67 {offsets = [1, 0], sizes = [1, 546], strides = [1, 1]} : vector<6x546xf32> to vector<1x546xf32>
    %77 = vector.broadcast %75 : vector<9x1xf32> to vector<9x546xf32>
    %78 = vector.broadcast %76 : vector<1x546xf32> to vector<9x546xf32>
    %79 = arith.mulf %77, %78 : vector<9x546xf32>
    %80 = arith.addf %74, %79 : vector<9x546xf32>
    %81 = vector.extract_strided_slice %2 {offsets = [0, 2], sizes = [9, 1], strides = [1, 1]} : vector<9x6xf32> to vector<9x1xf32>
    %82 = vector.extract_strided_slice %67 {offsets = [2, 0], sizes = [1, 546], strides = [1, 1]} : vector<6x546xf32> to vector<1x546xf32>
    %83 = vector.broadcast %81 : vector<9x1xf32> to vector<9x546xf32>
    %84 = vector.broadcast %82 : vector<1x546xf32> to vector<9x546xf32>
    %85 = arith.mulf %83, %84 : vector<9x546xf32>
    %86 = arith.addf %80, %85 : vector<9x546xf32>
    %87 = vector.extract_strided_slice %2 {offsets = [0, 3], sizes = [9, 1], strides = [1, 1]} : vector<9x6xf32> to vector<9x1xf32>
    %88 = vector.extract_strided_slice %67 {offsets = [3, 0], sizes = [1, 546], strides = [1, 1]} : vector<6x546xf32> to vector<1x546xf32>
    %89 = vector.broadcast %87 : vector<9x1xf32> to vector<9x546xf32>
    %90 = vector.broadcast %88 : vector<1x546xf32> to vector<9x546xf32>
    %91 = arith.mulf %89, %90 : vector<9x546xf32>
    %92 = arith.addf %86, %91 : vector<9x546xf32>
    %93 = vector.extract_strided_slice %2 {offsets = [0, 4], sizes = [9, 1], strides = [1, 1]} : vector<9x6xf32> to vector<9x1xf32>
    %94 = vector.extract_strided_slice %67 {offsets = [4, 0], sizes = [1, 546], strides = [1, 1]} : vector<6x546xf32> to vector<1x546xf32>
    %95 = vector.broadcast %93 : vector<9x1xf32> to vector<9x546xf32>
    %96 = vector.broadcast %94 : vector<1x546xf32> to vector<9x546xf32>
    %97 = arith.mulf %95, %96 : vector<9x546xf32>
    %98 = arith.addf %92, %97 : vector<9x546xf32>
    %99 = vector.extract_strided_slice %2 {offsets = [0, 5], sizes = [9, 1], strides = [1, 1]} : vector<9x6xf32> to vector<9x1xf32>
    %100 = vector.extract_strided_slice %67 {offsets = [5, 0], sizes = [1, 546], strides = [1, 1]} : vector<6x546xf32> to vector<1x546xf32>
    %101 = vector.broadcast %99 : vector<9x1xf32> to vector<9x546xf32>
    %102 = vector.broadcast %100 : vector<1x546xf32> to vector<9x546xf32>
    %103 = arith.mulf %101, %102 : vector<9x546xf32>
    %104 = arith.addf %98, %103 : vector<9x546xf32>
    %105 = vector.extract_strided_slice %104 {offsets = [0, 0], sizes = [1, 512], strides = [1, 1]} : vector<9x546xf32> to vector<1x512xf32>
    %106 = vector.extract_strided_slice %104 {offsets = [1, 1], sizes = [1, 512], strides = [1, 1]} : vector<9x546xf32> to vector<1x512xf32>
    %107 = vector.extract_strided_slice %104 {offsets = [2, 2], sizes = [1, 512], strides = [1, 1]} : vector<9x546xf32> to vector<1x512xf32>
    %108 = vector.extract_strided_slice %104 {offsets = [3, 16], sizes = [1, 512], strides = [1, 1]} : vector<9x546xf32> to vector<1x512xf32>
    %109 = vector.extract_strided_slice %104 {offsets = [4, 17], sizes = [1, 512], strides = [1, 1]} : vector<9x546xf32> to vector<1x512xf32>
    %110 = vector.extract_strided_slice %104 {offsets = [5, 18], sizes = [1, 512], strides = [1, 1]} : vector<9x546xf32> to vector<1x512xf32>
    %111 = vector.extract_strided_slice %104 {offsets = [6, 32], sizes = [1, 512], strides = [1, 1]} : vector<9x546xf32> to vector<1x512xf32>
    %112 = vector.extract_strided_slice %104 {offsets = [7, 33], sizes = [1, 512], strides = [1, 1]} : vector<9x546xf32> to vector<1x512xf32>
    %113 = vector.extract_strided_slice %104 {offsets = [8, 34], sizes = [1, 512], strides = [1, 1]} : vector<9x546xf32> to vector<1x512xf32>
    %114 = tpu.concatenate %105, %106, %107, %108, %109, %110, %111, %112, %113 in 0 : vector<1x512xf32>, vector<1x512xf32>, vector<1x512xf32>, vector<1x512xf32>, vector<1x512xf32>, vector<1x512xf32>, vector<1x512xf32>, vector<1x512xf32>, vector<1x512xf32> -> vector<9x512xf32>
    %115 = arith.mulf %114, %3 : vector<9x512xf32>
    %cst_31 = arith.constant dense<0.000000e+00> : vector<512xf32>
    %116 = vector.multi_reduction <add>, %115, %cst_31 [0] : vector<9x512xf32> to vector<512xf32>
    %117 = vector.shape_cast %116 : vector<512xf32> to vector<1x512xf32>
    %cst_32 = arith.constant 0.000000e+00 : f32
    %118 = vector.broadcast %cst_32 : f32 to vector<1x512xf32>
    %119 = arith.subf %118, %117 : vector<1x512xf32>
    %120 = math.exp %119 : vector<1x512xf32>
    %cst_33 = arith.constant 1.000000e+00 : f32
    %121 = vector.broadcast %cst_33 : f32 to vector<1x512xf32>
    %122 = arith.addf %121, %120 : vector<1x512xf32>
    %cst_34 = arith.constant 1.000000e+00 : f32
    %123 = vector.broadcast %cst_34 : f32 to vector<1x512xf32>
    %124 = arith.divf %123, %122 : vector<1x512xf32>
    %c0_35 = arith.constant 0 : index
    %c0_36 = arith.constant 0 : index
    %c0_37 = arith.constant 0 : index
    %125 = vector.load %arg1[%c0_35, %c0_36, %c0_37] : memref<2x32x512xf32, #tpu.memory_space<vmem>>, vector<1x32x512xf32>
    %126 = vector.shape_cast %125 : vector<1x32x512xf32> to vector<32x512xf32>
    %127 = vector.broadcast %47 : vector<32x1xf32> to vector<32x512xf32>
    %128 = arith.mulf %126, %127 : vector<32x512xf32>
    %129 = vector.broadcast %124 : vector<1x512xf32> to vector<32x512xf32>
    %130 = arith.mulf %128, %129 : vector<32x512xf32>
    %c0_38 = arith.constant 0 : index
    %c0_39 = arith.constant 0 : index
    %c0_40 = arith.constant 0 : index
    %131 = vector.load %arg6[%c0_38, %c0_39, %c0_40] : memref<2x32x512xf32, #tpu.memory_space<vmem>>, vector<1x32x512xf32>
    %132 = vector.shape_cast %131 : vector<1x32x512xf32> to vector<32x512xf32>
    %133 = vector.shape_cast %130 : vector<32x512xf32> to vector<1x32x512xf32>
    tpu.vector_store %arg6[%c0_38, %c0_39, %c0_40], %133 {strides = array<i32>} : memref<2x32x512xf32, #tpu.memory_space<vmem>>, vector<1x32x512xf32>,
    %c1 = arith.constant 1 : index
    %c0_41 = arith.constant 0 : index
    %c0_42 = arith.constant 0 : index
    %134 = vector.load %arg1[%c1, %c0_41, %c0_42] : memref<2x32x512xf32, #tpu.memory_space<vmem>>, vector<1x32x512xf32>
    %135 = vector.shape_cast %134 : vector<1x32x512xf32> to vector<32x512xf32>
    %cst_43 = arith.constant dense<0.000000e+00> : vector<32xf32>
    %136 = vector.multi_reduction <add>, %135, %cst_43 [1] : vector<32x512xf32> to vector<32xf32>
    %137 = vector.shape_cast %136 : vector<32xf32> to vector<32x1xf32>
    %cst_44 = arith.constant dense<0xFF800000> : vector<32xf32>
    %138 = vector.multi_reduction <maximumf>, %135, %cst_44 [1] : vector<32x512xf32> to vector<32xf32>
    %139 = vector.shape_cast %138 : vector<32xf32> to vector<32x1xf32>
    %cst_45 = arith.constant 0.001953125 : f32
    %140 = vector.broadcast %cst_45 : f32 to vector<32x1xf32>
    %141 = arith.mulf %137, %140 : vector<32x1xf32>
    %142 = vector.broadcast %141 : vector<32x1xf32> to vector<32x2xf32>
    %143 = arith.mulf %0, %142 : vector<32x2xf32>
    %cst_46 = arith.constant dense<0.000000e+00> : vector<2xf32>
    %144 = vector.multi_reduction <add>, %143, %cst_46 [0] : vector<32x2xf32> to vector<2xf32>
    %145 = vector.shape_cast %144 : vector<2xf32> to vector<1x2xf32>
    %cst_47 = arith.constant 0.000000e+00 : f32
    %146 = vector.broadcast %cst_47 : f32 to vector<1x2xf32>
    %147 = arith.cmpf ogt, %145, %146 : vector<1x2xf32>
    %148 = math.exp %145 : vector<1x2xf32>
    %cst_48 = arith.constant 1.000000e+00 : f32
    %149 = vector.broadcast %cst_48 : f32 to vector<1x2xf32>
    %150 = arith.subf %148, %149 : vector<1x2xf32>
    %151 = arith.select %147, %145, %150 : vector<1x2xi1>, vector<1x2xf32>
    %152 = vector.broadcast %151 : vector<1x2xf32> to vector<32x2xf32>
    %153 = arith.mulf %1, %152 : vector<32x2xf32>
    %cst_49 = arith.constant dense<0.000000e+00> : vector<32xf32>
    %154 = vector.multi_reduction <add>, %153, %cst_49 [1] : vector<32x2xf32> to vector<32xf32>
    %155 = vector.shape_cast %154 : vector<32xf32> to vector<32x1xf32>
    %156 = vector.broadcast %139 : vector<32x1xf32> to vector<32x2xf32>
    %157 = arith.mulf %0, %156 : vector<32x2xf32>
    %cst_50 = arith.constant dense<0.000000e+00> : vector<2xf32>
    %158 = vector.multi_reduction <add>, %157, %cst_50 [0] : vector<32x2xf32> to vector<2xf32>
    %159 = vector.shape_cast %158 : vector<2xf32> to vector<1x2xf32>
    %cst_51 = arith.constant 0.000000e+00 : f32
    %160 = vector.broadcast %cst_51 : f32 to vector<1x2xf32>
    %161 = arith.cmpf ogt, %159, %160 : vector<1x2xf32>
    %162 = math.exp %159 : vector<1x2xf32>
    %cst_52 = arith.constant 1.000000e+00 : f32
    %163 = vector.broadcast %cst_52 : f32 to vector<1x2xf32>
    %164 = arith.subf %162, %163 : vector<1x2xf32>
    %165 = arith.select %161, %159, %164 : vector<1x2xi1>, vector<1x2xf32>
    %166 = vector.broadcast %165 : vector<1x2xf32> to vector<32x2xf32>
    %167 = arith.mulf %1, %166 : vector<32x2xf32>
    %cst_53 = arith.constant dense<0.000000e+00> : vector<32xf32>
    %168 = vector.multi_reduction <add>, %167, %cst_53 [1] : vector<32x2xf32> to vector<32xf32>
    %169 = vector.shape_cast %168 : vector<32xf32> to vector<32x1xf32>
    %170 = arith.addf %155, %169 : vector<32x1xf32>
    %cst_54 = arith.constant 0.000000e+00 : f32
    %171 = vector.broadcast %cst_54 : f32 to vector<32x1xf32>
    %172 = arith.subf %171, %170 : vector<32x1xf32>
    %173 = math.exp %172 : vector<32x1xf32>
    %cst_55 = arith.constant 1.000000e+00 : f32
    %174 = vector.broadcast %cst_55 : f32 to vector<32x1xf32>
    %175 = arith.addf %174, %173 : vector<32x1xf32>
    %cst_56 = arith.constant 1.000000e+00 : f32
    %176 = vector.broadcast %cst_56 : f32 to vector<32x1xf32>
    %177 = arith.divf %176, %175 : vector<32x1xf32>
    %c1_57 = arith.constant 1 : index
    %c0_58 = arith.constant 0 : index
    %c0_59 = arith.constant 0 : index
    %178 = vector.load %arg1[%c1_57, %c0_58, %c0_59] : memref<2x32x512xf32, #tpu.memory_space<vmem>>, vector<1x32x512xf32>
    %179 = vector.shape_cast %178 : vector<1x32x512xf32> to vector<32x512xf32>
    %180 = vector.broadcast %177 : vector<32x1xf32> to vector<32x512xf32>
    %181 = arith.mulf %179, %180 : vector<32x512xf32>
    %cst_60 = arith.constant dense<0xFF800000> : vector<512xf32>
    %182 = vector.multi_reduction <maximumf>, %181, %cst_60 [0] : vector<32x512xf32> to vector<512xf32>
    %183 = vector.shape_cast %182 : vector<512xf32> to vector<1x512xf32>
    %cst_61 = arith.constant dense<0.000000e+00> : vector<512xf32>
    %184 = vector.multi_reduction <add>, %181, %cst_61 [0] : vector<32x512xf32> to vector<512xf32>
    %185 = vector.shape_cast %184 : vector<512xf32> to vector<1x512xf32>
    %cst_62 = arith.constant 3.125000e-02 : f32
    %186 = vector.broadcast %cst_62 : f32 to vector<1x512xf32>
    %187 = arith.mulf %185, %186 : vector<1x512xf32>
    %188 = tpu.concatenate %183, %187 in 0 : vector<1x512xf32>, vector<1x512xf32> -> vector<2x512xf32>
    %cst_63 = arith.constant 0.000000e+00 : f32
    %189 = vector.broadcast %cst_63 : f32 to vector<2x145xf32>
    %190 = tpu.concatenate %189, %188, %189 in 1 : vector<2x145xf32>, vector<2x512xf32>, vector<2x145xf32> -> vector<2x802xf32>
    %191 = vector.extract_strided_slice %190 {offsets = [0, 0], sizes = [1, 546], strides = [1, 1]} : vector<2x802xf32> to vector<1x546xf32>
    %192 = vector.extract_strided_slice %190 {offsets = [0, 128], sizes = [1, 546], strides = [1, 1]} : vector<2x802xf32> to vector<1x546xf32>
    %193 = vector.extract_strided_slice %190 {offsets = [0, 256], sizes = [1, 546], strides = [1, 1]} : vector<2x802xf32> to vector<1x546xf32>
    %194 = vector.extract_strided_slice %190 {offsets = [1, 0], sizes = [1, 546], strides = [1, 1]} : vector<2x802xf32> to vector<1x546xf32>
    %195 = vector.extract_strided_slice %190 {offsets = [1, 128], sizes = [1, 546], strides = [1, 1]} : vector<2x802xf32> to vector<1x546xf32>
    %196 = vector.extract_strided_slice %190 {offsets = [1, 256], sizes = [1, 546], strides = [1, 1]} : vector<2x802xf32> to vector<1x546xf32>
    %197 = tpu.concatenate %191, %192, %193, %194, %195, %196 in 0 : vector<1x546xf32>, vector<1x546xf32>, vector<1x546xf32>, vector<1x546xf32>, vector<1x546xf32>, vector<1x546xf32> -> vector<6x546xf32>
    %cst_64 = arith.constant 0.000000e+00 : f32
    %198 = vector.broadcast %cst_64 : f32 to vector<9x546xf32>
    %199 = vector.extract_strided_slice %2 {offsets = [0, 0], sizes = [9, 1], strides = [1, 1]} : vector<9x6xf32> to vector<9x1xf32>
    %200 = vector.extract_strided_slice %197 {offsets = [0, 0], sizes = [1, 546], strides = [1, 1]} : vector<6x546xf32> to vector<1x546xf32>
    %201 = vector.broadcast %199 : vector<9x1xf32> to vector<9x546xf32>
    %202 = vector.broadcast %200 : vector<1x546xf32> to vector<9x546xf32>
    %203 = arith.mulf %201, %202 : vector<9x546xf32>
    %204 = arith.addf %198, %203 : vector<9x546xf32>
    %205 = vector.extract_strided_slice %2 {offsets = [0, 1], sizes = [9, 1], strides = [1, 1]} : vector<9x6xf32> to vector<9x1xf32>
    %206 = vector.extract_strided_slice %197 {offsets = [1, 0], sizes = [1, 546], strides = [1, 1]} : vector<6x546xf32> to vector<1x546xf32>
    %207 = vector.broadcast %205 : vector<9x1xf32> to vector<9x546xf32>
    %208 = vector.broadcast %206 : vector<1x546xf32> to vector<9x546xf32>
    %209 = arith.mulf %207, %208 : vector<9x546xf32>
    %210 = arith.addf %204, %209 : vector<9x546xf32>
    %211 = vector.extract_strided_slice %2 {offsets = [0, 2], sizes = [9, 1], strides = [1, 1]} : vector<9x6xf32> to vector<9x1xf32>
    %212 = vector.extract_strided_slice %197 {offsets = [2, 0], sizes = [1, 546], strides = [1, 1]} : vector<6x546xf32> to vector<1x546xf32>
    %213 = vector.broadcast %211 : vector<9x1xf32> to vector<9x546xf32>
    %214 = vector.broadcast %212 : vector<1x546xf32> to vector<9x546xf32>
    %215 = arith.mulf %213, %214 : vector<9x546xf32>
    %216 = arith.addf %210, %215 : vector<9x546xf32>
    %217 = vector.extract_strided_slice %2 {offsets = [0, 3], sizes = [9, 1], strides = [1, 1]} : vector<9x6xf32> to vector<9x1xf32>
    %218 = vector.extract_strided_slice %197 {offsets = [3, 0], sizes = [1, 546], strides = [1, 1]} : vector<6x546xf32> to vector<1x546xf32>
    %219 = vector.broadcast %217 : vector<9x1xf32> to vector<9x546xf32>
    %220 = vector.broadcast %218 : vector<1x546xf32> to vector<9x546xf32>
    %221 = arith.mulf %219, %220 : vector<9x546xf32>
    %222 = arith.addf %216, %221 : vector<9x546xf32>
    %223 = vector.extract_strided_slice %2 {offsets = [0, 4], sizes = [9, 1], strides = [1, 1]} : vector<9x6xf32> to vector<9x1xf32>
    %224 = vector.extract_strided_slice %197 {offsets = [4, 0], sizes = [1, 546], strides = [1, 1]} : vector<6x546xf32> to vector<1x546xf32>
    %225 = vector.broadcast %223 : vector<9x1xf32> to vector<9x546xf32>
    %226 = vector.broadcast %224 : vector<1x546xf32> to vector<9x546xf32>
    %227 = arith.mulf %225, %226 : vector<9x546xf32>
    %228 = arith.addf %222, %227 : vector<9x546xf32>
    %229 = vector.extract_strided_slice %2 {offsets = [0, 5], sizes = [9, 1], strides = [1, 1]} : vector<9x6xf32> to vector<9x1xf32>
    %230 = vector.extract_strided_slice %197 {offsets = [5, 0], sizes = [1, 546], strides = [1, 1]} : vector<6x546xf32> to vector<1x546xf32>
    %231 = vector.broadcast %229 : vector<9x1xf32> to vector<9x546xf32>
    %232 = vector.broadcast %230 : vector<1x546xf32> to vector<9x546xf32>
    %233 = arith.mulf %231, %232 : vector<9x546xf32>
    %234 = arith.addf %228, %233 : vector<9x546xf32>
    %235 = vector.extract_strided_slice %234 {offsets = [0, 0], sizes = [1, 512], strides = [1, 1]} : vector<9x546xf32> to vector<1x512xf32>
    %236 = vector.extract_strided_slice %234 {offsets = [1, 1], sizes = [1, 512], strides = [1, 1]} : vector<9x546xf32> to vector<1x512xf32>
    %237 = vector.extract_strided_slice %234 {offsets = [2, 2], sizes = [1, 512], strides = [1, 1]} : vector<9x546xf32> to vector<1x512xf32>
    %238 = vector.extract_strided_slice %234 {offsets = [3, 16], sizes = [1, 512], strides = [1, 1]} : vector<9x546xf32> to vector<1x512xf32>
    %239 = vector.extract_strided_slice %234 {offsets = [4, 17], sizes = [1, 512], strides = [1, 1]} : vector<9x546xf32> to vector<1x512xf32>
    %240 = vector.extract_strided_slice %234 {offsets = [5, 18], sizes = [1, 512], strides = [1, 1]} : vector<9x546xf32> to vector<1x512xf32>
    %241 = vector.extract_strided_slice %234 {offsets = [6, 32], sizes = [1, 512], strides = [1, 1]} : vector<9x546xf32> to vector<1x512xf32>
    %242 = vector.extract_strided_slice %234 {offsets = [7, 33], sizes = [1, 512], strides = [1, 1]} : vector<9x546xf32> to vector<1x512xf32>
    %243 = vector.extract_strided_slice %234 {offsets = [8, 34], sizes = [1, 512], strides = [1, 1]} : vector<9x546xf32> to vector<1x512xf32>
    %244 = tpu.concatenate %235, %236, %237, %238, %239, %240, %241, %242, %243 in 0 : vector<1x512xf32>, vector<1x512xf32>, vector<1x512xf32>, vector<1x512xf32>, vector<1x512xf32>, vector<1x512xf32>, vector<1x512xf32>, vector<1x512xf32>, vector<1x512xf32> -> vector<9x512xf32>
    %245 = arith.mulf %244, %3 : vector<9x512xf32>
    %cst_65 = arith.constant dense<0.000000e+00> : vector<512xf32>
    %246 = vector.multi_reduction <add>, %245, %cst_65 [0] : vector<9x512xf32> to vector<512xf32>
    %247 = vector.shape_cast %246 : vector<512xf32> to vector<1x512xf32>
    %cst_66 = arith.constant 0.000000e+00 : f32
    %248 = vector.broadcast %cst_66 : f32 to vector<1x512xf32>
    %249 = arith.subf %248, %247 : vector<1x512xf32>
    %250 = math.exp %249 : vector<1x512xf32>
    %cst_67 = arith.constant 1.000000e+00 : f32
    %251 = vector.broadcast %cst_67 : f32 to vector<1x512xf32>
    %252 = arith.addf %251, %250 : vector<1x512xf32>
    %cst_68 = arith.constant 1.000000e+00 : f32
    %253 = vector.broadcast %cst_68 : f32 to vector<1x512xf32>
    %254 = arith.divf %253, %252 : vector<1x512xf32>
    %c1_69 = arith.constant 1 : index
    %c0_70 = arith.constant 0 : index
    %c0_71 = arith.constant 0 : index
    %255 = vector.load %arg1[%c1_69, %c0_70, %c0_71] : memref<2x32x512xf32, #tpu.memory_space<vmem>>, vector<1x32x512xf32>
    %256 = vector.shape_cast %255 : vector<1x32x512xf32> to vector<32x512xf32>
    %257 = vector.broadcast %177 : vector<32x1xf32> to vector<32x512xf32>
    %258 = arith.mulf %256, %257 : vector<32x512xf32>
    %259 = vector.broadcast %254 : vector<1x512xf32> to vector<32x512xf32>
    %260 = arith.mulf %258, %259 : vector<32x512xf32>
    %c1_72 = arith.constant 1 : index
    %c0_73 = arith.constant 0 : index
    %c0_74 = arith.constant 0 : index
    %261 = vector.load %arg6[%c1_72, %c0_73, %c0_74] : memref<2x32x512xf32, #tpu.memory_space<vmem>>, vector<1x32x512xf32>
    %262 = vector.shape_cast %261 : vector<1x32x512xf32> to vector<32x512xf32>
    %263 = vector.shape_cast %260 : vector<32x512xf32> to vector<1x32x512xf32>
    tpu.vector_store %arg6[%c1_72, %c0_73, %c0_74], %263 {strides = array<i32>} : memref<2x32x512xf32, #tpu.memory_space<vmem>>, vector<1x32x512xf32>,
    return
  }
  func.func @transform_0(%arg0: i32) -> (i32, i32, i32) {
    %c0_i32 = arith.constant 0 : i32
    %c0_i32_0 = arith.constant 0 : i32
    %c0_i32_1 = arith.constant 0 : i32
    return %arg0, %c0_i32, %c0_i32_0 : i32, i32, i32
  }
  func.func @transform_1(%arg0: i32) -> (i32, i32) {
    %c0_i32 = arith.constant 0 : i32
    %c0_i32_0 = arith.constant 0 : i32
    %c0_i32_1 = arith.constant 0 : i32
    return %c0_i32, %c0_i32_0 : i32, i32
  }
  func.func @transform_2(%arg0: i32) -> (i32, i32) {
    %c0_i32 = arith.constant 0 : i32
    %c0_i32_0 = arith.constant 0 : i32
    %c0_i32_1 = arith.constant 0 : i32
    return %c0_i32, %c0_i32_0 : i32, i32
  }
  func.func @transform_3(%arg0: i32) -> (i32, i32) {
    %c0_i32 = arith.constant 0 : i32
    %c0_i32_0 = arith.constant 0 : i32
    %c0_i32_1 = arith.constant 0 : i32
    return %c0_i32, %c0_i32_0 : i32, i32
  }
  func.func @transform_4(%arg0: i32) -> (i32, i32) {
    %c0_i32 = arith.constant 0 : i32
    %c0_i32_0 = arith.constant 0 : i32
    %c0_i32_1 = arith.constant 0 : i32
    return %c0_i32, %c0_i32_0 : i32, i32
  }
  func.func @transform_5(%arg0: i32) -> (i32, i32, i32) {
    %c0_i32 = arith.constant 0 : i32
    %c0_i32_0 = arith.constant 0 : i32
    %c0_i32_1 = arith.constant 0 : i32
    return %arg0, %c0_i32, %c0_i32_0 : i32, i32, i32
  }
}

</mosaic_0001>

<llo_original>
// kernel: tpu_custom_call.1
$region0: #{tpu_custom_call.1}
  #allocation0 [shape = 'u32[]', space=smem, size = 0x4, offset = 0x4, fixed_abs, tag = 'smem constant byte address 0x4 - core index']
  #allocation1 [shape = 'u32[144,128]{1,0:T(1,128)}', space=vmem, size = 0x12000, scoped, tag = 'internal scratch']
  %s0 = inlined_call_operand.hbm [shape: f32[2,32,512], index: 0, kind: input, shape index: {}]
  %s1 = inlined_call_operand.vmem [shape: f32[32,2], index: 1, kind: input, shape index: {}]
  %s2 = inlined_call_operand.vmem [shape: f32[32,2], index: 2, kind: input, shape index: {}]
  %s3 = inlined_call_operand.vmem [shape: f32[9,6], index: 3, kind: input, shape index: {}]
  %s4 = inlined_call_operand.vmem [shape: f32[9,512], index: 4, kind: input, shape index: {}]
  %s5 = inlined_call_operand.hbm [shape: f32[2,32,512], index: 5, kind: output, shape index: {}]
  %s6 = sld [smem:[#allocation0]]
  $region34: #{tpu_custom_call.1} parent=0
    _
  %s8 = ssub.s32 1, %s6
  %s9 = scalar_select 0, %s8, %s6
  $region1: #{tpu_custom_call.1} parent=0
    #allocation2 [shape = 'u8[131072]{0}', space=vmem, size = 0x20000, scoped, tag = 'input window, operand 0, single buffered']
    #allocation3 [shape = 's32[1]{0}', space=sflag, size = 0x4, scoped, tag = 'scoped memory for tpu_custom_call.1']
    #allocation4 [shape = 's32[1]{0}', space=sflag, size = 0x4, scoped, tag = 'scoped memory for tpu_custom_call.1']
    #allocation5 [shape = 'u8[131072]{0}', space=vmem, size = 0x20000, scoped, tag = 'output window, operand 0, single buffered']
    %10 = vsyncpa [#allocation3], 0
    %11 = vsyncpa [#allocation4], 0
    // Predicated region
    $region2: #{tpu_custom_call.1} parent=1 // pred_check
      _
    $region3: #{tpu_custom_call.1} parent=1 // pred_check_branch
      %13 = sbr.rel (0) target = $region5
    $region4: #{tpu_custom_call.1} parent=1 // pred_region
      %s15 = ssub.s32 4096, 4096
      %16 = vsyncadd [#allocation3], %s15
      %s17 = sshll.u32 [#allocation2], 4
      %s18 = int_to_ptr.vmem [resolvable:$true] %s17
      %23 = dma.hbm_to_vmem [thread:$0]  %s0, 4096, %s18, [#allocation3], 512, 512, 32
    $region5: #{tpu_custom_call.1} parent=1 // pred_fallthru
      _
    // Predicated region
    $region6: #{tpu_custom_call.1} parent=1 // pred_check
      _
    $region7: #{tpu_custom_call.1} parent=1 // pred_check_branch
      %25 = sbr.rel (0) target = $region9
    $region8: #{tpu_custom_call.1} parent=1 // pred_region
      _
    $region9: #{tpu_custom_call.1} parent=1 // pred_fallthru
      _
    // Predicated region
    $region10: #{tpu_custom_call.1} parent=1 // pred_check
      _
    $region11: #{tpu_custom_call.1} parent=1 // pred_check_branch
      %27 = sbr.rel (0) target = $region13
    $region12: #{tpu_custom_call.1} parent=1 // pred_region
      _
    $region13: #{tpu_custom_call.1} parent=1 // pred_fallthru
      _
    // Predicated region
    $region14: #{tpu_custom_call.1} parent=1 // pred_check
      _
    $region15: #{tpu_custom_call.1} parent=1 // pred_check_branch
      %29 = sbr.rel (0) target = $region17
    $region16: #{tpu_custom_call.1} parent=1 // pred_region
      _
    $region17: #{tpu_custom_call.1} parent=1 // pred_fallthru
      _
    // Predicated region
    $region18: #{tpu_custom_call.1} parent=1 // pred_check
      _
    $region19: #{tpu_custom_call.1} parent=1 // pred_check_branch
      %31 = sbr.rel (0) target = $region21
    $region20: #{tpu_custom_call.1} parent=1 // pred_region
      _
    $region21: #{tpu_custom_call.1} parent=1 // pred_fallthru
      _
    // Predicated region
    $region22: #{tpu_custom_call.1} parent=1 // pred_check
      _
    $region23: #{tpu_custom_call.1} parent=1 // pred_check_branch
      %33 = sbr.rel (0) target = $region25
    $region24: #{tpu_custom_call.1} parent=1 // pred_region
      %34 = dma.done [#allocation3], 4096
    $region25: #{tpu_custom_call.1} parent=1 // pred_fallthru
      _
    %v35 = vld [vmem:[%s1] sm:$0xff]
    %v36 = vld [vmem:[%s1 + $0x8] sm:$0xff]
    %v37 = vld [vmem:[%s1 + $0x10] sm:$0xff]
    %v38 = vld [vmem:[%s1 + $0x18] sm:$0xff]
    %v39 = vld [vmem:[%s2] sm:$0xff]
    %v40 = vld [vmem:[%s2 + $0x8] sm:$0xff]
    %v41 = vld [vmem:[%s2 + $0x10] sm:$0xff]
    %v42 = vld [vmem:[%s2 + $0x18] sm:$0xff]
    %v43 = vld [vmem:[%s3] sm:$0xff]
    %v44 = vld [vmem:[%s3 + $0x8] sm:$0x1]
    %v45 = vld [vmem:[%s4] sm:$0xff]
    %v46 = vld [vmem:[%s4 + $0x8] sm:$0xff]
    %v47 = vld [vmem:[%s4 + $0x10] sm:$0xff]
    %v48 = vld [vmem:[%s4 + $0x18] sm:$0xff]
    %v49 = vld [vmem:[%s4 + $0x20] sm:$0x1]
    %v50 = vld [vmem:[%s4 + $0x28] sm:$0x1]
    %v51 = vld [vmem:[%s4 + $0x30] sm:$0x1]
    %v52 = vld [vmem:[%s4 + $0x38] sm:$0x1]
    %v53 = vld [vmem:[#allocation2] sm:$0xff]
    %v54 = vld [vmem:[#allocation2 + $0x8] sm:$0xff]
    %v55 = vld [vmem:[#allocation2 + $0x10] sm:$0xff]
    %v56 = vld [vmem:[#allocation2 + $0x18] sm:$0xff]
    %v57 = vld [vmem:[#allocation2 + $0x20] sm:$0xff]
    %v58 = vld [vmem:[#allocation2 + $0x28] sm:$0xff]
    %v59 = vld [vmem:[#allocation2 + $0x30] sm:$0xff]
    %v60 = vld [vmem:[#allocation2 + $0x38] sm:$0xff]
    %v61 = vld [vmem:[#allocation2 + $0x40] sm:$0xff]
    %v62 = vld [vmem:[#allocation2 + $0x48] sm:$0xff]
    %v63 = vld [vmem:[#allocation2 + $0x50] sm:$0xff]
    %v64 = vld [vmem:[#allocation2 + $0x58] sm:$0xff]
    %v65 = vld [vmem:[#allocation2 + $0x60] sm:$0xff]
    %v66 = vld [vmem:[#allocation2 + $0x68] sm:$0xff]
    %v67 = vld [vmem:[#allocation2 + $0x70] sm:$0xff]
    %v68 = vld [vmem:[#allocation2 + $0x78] sm:$0xff]
    %v69 = vadd.f32 %v53, %v54
    %v70 = vadd.f32 %v69, %v55
    %v71 = vadd.f32 %v70, %v56
    %72 = vadd.xlane.f32.xlu0 %v71
    %v73 = vpop.xlane.xlu0 %72
    %v74 = vadd.f32 %v57, %v58
    %v75 = vadd.f32 %v74, %v59
    %v76 = vadd.f32 %v75, %v60
    %77 = vadd.xlane.f32.xlu0 %v76
    %v78 = vpop.xlane.xlu0 %77
    %v79 = vadd.f32 %v61, %v62
    %v80 = vadd.f32 %v79, %v63
    %v81 = vadd.f32 %v80, %v64
    %82 = vadd.xlane.f32.xlu0 %v81
    %v83 = vpop.xlane.xlu0 %82
    %v84 = vadd.f32 %v65, %v66
    %v85 = vadd.f32 %v84, %v67
    %v86 = vadd.f32 %v85, %v68
    %87 = vadd.xlane.f32.xlu0 %v86
    %v88 = vpop.xlane.xlu0 %87
    %v89 = vmax.f32 %v53, %v54
    %v90 = vmax.f32 %v89, %v55
    %v91 = vmax.f32 %v90, %v56
    %92 = vmax.xlane.f32.xlu0 %v91
    %v93 = vpop.xlane.xlu0 %92
    %v94 = vmax.f32 %v57, %v58
    %v95 = vmax.f32 %v94, %v59
    %v96 = vmax.f32 %v95, %v60
    %97 = vmax.xlane.f32.xlu0 %v96
    %v98 = vpop.xlane.xlu0 %97
    %v99 = vmax.f32 %v61, %v62
    %v100 = vmax.f32 %v99, %v63
    %v101 = vmax.f32 %v100, %v64
    %102 = vmax.xlane.f32.xlu0 %v101
    %v103 = vpop.xlane.xlu0 %102
    %v104 = vmax.f32 %v65, %v66
    %v105 = vmax.f32 %v104, %v67
    %v106 = vmax.f32 %v105, %v68
    %107 = vmax.xlane.f32.xlu0 %v106
    %v108 = vpop.xlane.xlu0 %107
    %v109 = vmul.f32 %v73, 0.001953125
    %v110 = vmul.f32 %v78, 0.001953125
    %v111 = vmul.f32 %v83, 0.001953125
    %v112 = vmul.f32 %v88, 0.001953125
    %v113 = vmul.f32 %v35, %v109
    %v114 = vmul.f32 %v36, %v110
    %v115 = vmul.f32 %v37, %v111
    %v116 = vmul.f32 %v38, %v112
    %vm117 = vcmask 15360
    %v118 = vsel %vm117, %v113, 0.0
    %v119 = vsel %vm117, %v114, 0.0
    %v120 = vadd.f32 %v118, %v119
    %v121 = vsel %vm117, %v115, 0.0
    %v122 = vadd.f32 %v120, %v121
    %v123 = vsel %vm117, %v116, 0.0
    %v124 = vadd.f32 %v122, %v123
    %v125 = vrot.slane %v124, 4
    %v126 = vadd.f32 %v124, %v125
    %v127 = vrot.slane %v126, 2
    %v128 = vadd.f32 %v126, %v127
    %v129 = vrot.slane %v128, 1
    %v130 = vadd.f32 %v128, %v129
    %vm131 = vcmp.gt.f32.partialorder %v130, 0.0
    %v132 = vmul.f32 %v130, 1.442695
    %v133 = vpow.pop %v132
    %v134 = vsub.f32 %v133, 1.0
    %v135 = vsel %vm131, %v130, %v134
    %v136 = vmul.f32 %v39, %v135
    %v137 = vmul.f32 %v40, %v135
    %v138 = vmul.f32 %v41, %v135
    %v139 = vmul.f32 %v42, %v135
    %v140 = vsel %vm117, %v136, 0.0
    %141 = vadd.xlane.f32.xlu0 %v140
    %v142 = vpop.xlane.xlu0 %141
    %v143 = vsel %vm117, %v137, 0.0
    %144 = vadd.xlane.f32.xlu0 %v143
    %v145 = vpop.xlane.xlu0 %144
    %v146 = vsel %vm117, %v138, 0.0
    %147 = vadd.xlane.f32.xlu0 %v146
    %v148 = vpop.xlane.xlu0 %147
    %v149 = vsel %vm117, %v139, 0.0
    %150 = vadd.xlane.f32.xlu0 %v149
    %v151 = vpop.xlane.xlu0 %150
    %v152 = vmul.f32 %v35, %v93
    %v153 = vmul.f32 %v36, %v98
    %v154 = vmul.f32 %v37, %v103
    %v155 = vmul.f32 %v38, %v108
    %v156 = vsel %vm117, %v152, 0.0
    %v157 = vsel %vm117, %v153, 0.0
    %v158 = vadd.f32 %v156, %v157
    %v159 = vsel %vm117, %v154, 0.0
    %v160 = vadd.f32 %v158, %v159
    %v161 = vsel %vm117, %v155, 0.0
    %v162 = vadd.f32 %v160, %v161
    %v163 = vrot.slane %v162, 4
    %v164 = vadd.f32 %v162, %v163
    %v165 = vrot.slane %v164, 2
    %v166 = vadd.f32 %v164, %v165
    %v167 = vrot.slane %v166, 1
    %v168 = vadd.f32 %v166, %v167
    %vm169 = vcmp.gt.f32.partialorder %v168, 0.0
    %v170 = vmul.f32 %v168, 1.442695
    %v171 = vpow.pop %v170
    %v172 = vsub.f32 %v171, 1.0
    %v173 = vsel %vm169, %v168, %v172
    %v174 = vmul.f32 %v39, %v173
    %v175 = vmul.f32 %v40, %v173
    %v176 = vmul.f32 %v41, %v173
    %v177 = vmul.f32 %v42, %v173
    %v178 = vsel %vm117, %v174, 0.0
    %179 = vadd.xlane.f32.xlu0 %v178
    %v180 = vpop.xlane.xlu0 %179
    %v181 = vsel %vm117, %v175, 0.0
    %182 = vadd.xlane.f32.xlu0 %v181
    %v183 = vpop.xlane.xlu0 %182
    %v184 = vsel %vm117, %v176, 0.0
    %185 = vadd.xlane.f32.xlu0 %v184
    %v186 = vpop.xlane.xlu0 %185
    %v187 = vsel %vm117, %v177, 0.0
    %188 = vadd.xlane.f32.xlu0 %v187
    %v189 = vpop.xlane.xlu0 %188
    %v190 = vadd.f32 %v142, %v180
    %v191 = vadd.f32 %v145, %v183
    %v192 = vadd.f32 %v148, %v186
    %v193 = vadd.f32 %v151, %v189
    %v194 = vsub.f32 0.0, %v190
    %v195 = vsub.f32 0.0, %v191
    %v196 = vsub.f32 0.0, %v192
    %v197 = vsub.f32 0.0, %v193
    %v198 = vmul.f32 %v194, 1.442695
    %v199 = vpow.pop %v198
    %v200 = vmul.f32 %v195, 1.442695
    %v201 = vpow.pop %v200
    %v202 = vmul.f32 %v196, 1.442695
    %v203 = vpow.pop %v202
    %v204 = vmul.f32 %v197, 1.442695
    %v205 = vpow.pop %v204
    %v206 = vadd.f32 %v199, 1.0
    %v207 = vadd.f32 %v201, 1.0
    %v208 = vadd.f32 %v203, 1.0
    %v209 = vadd.f32 %v205, 1.0
    %v210 = vrcp.pop %v206
    %v211 = vmul.f32 1.0, %v210
    %v212 = vrcp.pop %v207
    %v213 = vmul.f32 1.0, %v212
    %v214 = vrcp.pop %v208
    %v215 = vmul.f32 1.0, %v214
    %v216 = vrcp.pop %v209
    %v217 = vmul.f32 1.0, %v216
    %v218 = vmul.f32 %v53, %v211
    %v219 = vmul.f32 %v54, %v211
    %v220 = vmul.f32 %v55, %v211
    %v221 = vmul.f32 %v56, %v211
    %v222 = vmul.f32 %v57, %v213
    %v223 = vmul.f32 %v58, %v213
    %v224 = vmul.f32 %v59, %v213
    %v225 = vmul.f32 %v60, %v213
    %v226 = vmul.f32 %v61, %v215
    %v227 = vmul.f32 %v62, %v215
    %v228 = vmul.f32 %v63, %v215
    %v229 = vmul.f32 %v64, %v215
    %v230 = vmul.f32 %v65, %v217
    %v231 = vmul.f32 %v66, %v217
    %v232 = vmul.f32 %v67, %v217
    %v233 = vmul.f32 %v68, %v217
    %v234 = vmax.f32 %v218, %v222
    %v235 = vmax.f32 %v234, %v226
    %v236 = vmax.f32 %v235, %v230
    %v237 = vrot.slane %v236, 4
    %v238 = vmax.f32 %v236, %v237
    %v239 = vrot.slane %v238, 2
    %v240 = vmax.f32 %v238, %v239
    %v241 = vrot.slane %v240, 1
    %v242 = vmax.f32 %v240, %v241
    %v243 = vmax.f32 %v219, %v223
    %v244 = vmax.f32 %v243, %v227
    %v245 = vmax.f32 %v244, %v231
    %v246 = vrot.slane %v245, 4
    %v247 = vmax.f32 %v245, %v246
    %v248 = vrot.slane %v247, 2
    %v249 = vmax.f32 %v247, %v248
    %v250 = vrot.slane %v249, 1
    %v251 = vmax.f32 %v249, %v250
    %v252 = vmax.f32 %v220, %v224
    %v253 = vmax.f32 %v252, %v228
    %v254 = vmax.f32 %v253, %v232
    %v255 = vrot.slane %v254, 4
    %v256 = vmax.f32 %v254, %v255
    %v257 = vrot.slane %v256, 2
    %v258 = vmax.f32 %v256, %v257
    %v259 = vrot.slane %v258, 1
    %v260 = vmax.f32 %v258, %v259
    %v261 = vmax.f32 %v221, %v225
    %v262 = vmax.f32 %v261, %v229
    %v263 = vmax.f32 %v262, %v233
    %v264 = vrot.slane %v263, 4
    %v265 = vmax.f32 %v263, %v264
    %v266 = vrot.slane %v265, 2
    %v267 = vmax.f32 %v265, %v266
    %v268 = vrot.slane %v267, 1
    %v269 = vmax.f32 %v267, %v268
    %v270 = vadd.f32 %v218, %v222
    %v271 = vadd.f32 %v270, %v226
    %v272 = vadd.f32 %v271, %v230
    %v273 = vrot.slane %v272, 4
    %v274 = vadd.f32 %v272, %v273
    %v275 = vrot.slane %v274, 2
    %v276 = vadd.f32 %v274, %v275
    %v277 = vrot.slane %v276, 1
    %v278 = vadd.f32 %v276, %v277
    %v279 = vadd.f32 %v219, %v223
    %v280 = vadd.f32 %v279, %v227
    %v281 = vadd.f32 %v280, %v231
    %v282 = vrot.slane %v281, 4
    %v283 = vadd.f32 %v281, %v282
    %v284 = vrot.slane %v283, 2
    %v285 = vadd.f32 %v283, %v284
    %v286 = vrot.slane %v285, 1
    %v287 = vadd.f32 %v285, %v286
    %v288 = vadd.f32 %v220, %v224
    %v289 = vadd.f32 %v288, %v228
    %v290 = vadd.f32 %v289, %v232
    %v291 = vrot.slane %v290, 4
    %v292 = vadd.f32 %v290, %v291
    %v293 = vrot.slane %v292, 2
    %v294 = vadd.f32 %v292, %v293
    %v295 = vrot.slane %v294, 1
    %v296 = vadd.f32 %v294, %v295
    %v297 = vadd.f32 %v221, %v225
    %v298 = vadd.f32 %v297, %v229
    %v299 = vadd.f32 %v298, %v233
    %v300 = vrot.slane %v299, 4
    %v301 = vadd.f32 %v299, %v300
    %v302 = vrot.slane %v301, 2
    %v303 = vadd.f32 %v301, %v302
    %v304 = vrot.slane %v303, 1
    %v305 = vadd.f32 %v303, %v304
    %v306 = vmul.f32 %v278, 0.03125
    %v307 = vmul.f32 %v287, 0.03125
    %v308 = vmul.f32 %v296, 0.03125
    %v309 = vmul.f32 %v305, 0.03125
    %vm310 = vcmask 1040384
    %v311 = vsel %vm310, %v242, %v306
    %v312 = vsel %vm310, %v251, %v307
    %v313 = vsel %vm310, %v260, %v308
    %v314 = vsel %vm310, %v269, %v309
    %319 = vrot.lane.b32.xlu0 %v311, 17
    %v320 = vpop.permute.xlu0 %319
    %321 = vrot.lane.b32.xlu0 %v312, 17
    %v322 = vpop.permute.xlu0 %321
    %323 = vrot.lane.b32.xlu0 %v313, 17
    %v324 = vpop.permute.xlu0 %323
    %325 = vrot.lane.b32.xlu0 %v314, 17
    %v326 = vpop.permute.xlu0 %325
    %vm327 = vcmask 138240
    %v328 = vsel %vm327, %v320, %v322
    %v329 = vsel %vm327, %v322, %v324
    %v330 = vsel %vm327, %v324, %v326
    %v336 = vsel %vm327, 0.0, %v320
    %v337 = vsel %vm327, %v326, 0.0
    %v340 = vrot.slane %v336, 7
    %v341 = vrot.slane %v328, 7
    %v342 = vrot.slane %v329, 7
    %v343 = vrot.slane %v330, 7
    %v344 = vrot.slane %v337, 7
    %v351 = vrot.slane %v328, 6
    %v352 = vrot.slane %v329, 6
    %v353 = vrot.slane %v330, 6
    %v354 = vrot.slane %v337, 6
    %v355 = vrot.slane 0.0, 6
    %v361 = vrot.slane %v336, 6
    %v363 = vrot.slane %v336, 5
    %v364 = vrot.slane %v328, 5
    %v365 = vrot.slane %v329, 5
    %v366 = vrot.slane %v330, 5
    %v367 = vrot.slane %v337, 5
    %v373 = vrot.slane %v328, 4
    %v374 = vrot.slane %v329, 4
    %v375 = vrot.slane %v330, 4
    %v376 = vrot.slane %v337, 4
    %v377 = vrot.slane 0.0, 4
    %v383 = vsel %vm310, 0.0, %v340
    %v384 = vsel %vm310, %v336, %v341
    %v385 = vsel %vm310, %v328, %v342
    %v386 = vsel %vm310, %v329, %v343
    %v387 = vsel %vm310, %v330, %v344
    %vm388 = vcmask 1041408
    %v389 = vsel %vm388, %v383, %v351
    %v390 = vsel %vm388, %v384, %v352
    %v391 = vsel %vm388, %v385, %v353
    %v392 = vsel %vm388, %v386, %v354
    %v393 = vsel %vm388, %v387, %v355
    %vm394 = vcmask 1042432
    %v395 = vsel %vm394, %v389, %v355
    %v396 = vsel %vm394, %v390, %v361
    %v397 = vsel %vm394, %v391, %v351
    %v398 = vsel %vm394, %v392, %v352
    %v399 = vsel %vm394, %v393, %v353
    %vm400 = vcmask 1043456
    %v401 = vsel %vm400, %v395, %v363
    %v402 = vsel %vm400, %v396, %v364
    %v403 = vsel %vm400, %v397, %v365
    %v404 = vsel %vm400, %v398, %v366
    %v405 = vsel %vm400, %v399, %v367
    %vm406 = vcmask 1044480
    %v407 = vsel %vm406, %v401, %v373
    %v408 = vsel %vm406, %v402, %v374
    %v409 = vsel %vm406, %v403, %v375
    %v410 = vsel %vm406, %v404, %v376
    %v411 = vsel %vm406, %v405, %v377
    %413 = vset.pattern.permute.xlu0 0
    %414 = vperm.xlu0 %413, %v43
    %v415 = vpop.permute.xlu0 %414
    %418 = vset.pattern.permute.xlu0 0
    %419 = vperm.xlu0 %418, %v44
    %v420 = vpop.permute.xlu0 %419
    %v422 = vlaneseq
    %v423 = vshrl.u32 %v422, 7
    %v424 = vsub.s32 0, %v423
    %v425 = vrot.slane %v407, %v424
    %v426 = vlaneseq
    %v427 = vshrl.u32 %v426, 7
    %v428 = vsub.s32 0, %v427
    %v429 = vrot.slane %v408, %v428
    %v430 = vlaneseq
    %v431 = vshrl.u32 %v430, 7
    %v432 = vsub.s32 0, %v431
    %v433 = vrot.slane %v409, %v432
    %v434 = vlaneseq
    %v435 = vshrl.u32 %v434, 7
    %v436 = vsub.s32 0, %v435
    %v437 = vrot.slane %v410, %v436
    %v438 = vlaneseq
    %v439 = vshrl.u32 %v438, 7
    %v440 = vsub.s32 0, %v439
    %v441 = vrot.slane %v411, %v440
    %v442 = vmul.f32 %v415, %v425
    %v443 = vmul.f32 %v415, %v429
    %v444 = vmul.f32 %v415, %v433
    %v445 = vmul.f32 %v415, %v437
    %v446 = vmul.f32 %v415, %v441
    %v447 = vmul.f32 %v420, %v425
    %v448 = vmul.f32 %v420, %v429
    %v449 = vmul.f32 %v420, %v433
    %v450 = vmul.f32 %v420, %v437
    %v451 = vmul.f32 %v420, %v441
    %v452 = vadd.f32 %v442, 0.0
    %v453 = vadd.f32 %v443, 0.0
    %v454 = vadd.f32 %v444, 0.0
    %v455 = vadd.f32 %v445, 0.0
    %v456 = vadd.f32 %v446, 0.0
    %v457 = vadd.f32 %v447, 0.0
    %v458 = vadd.f32 %v448, 0.0
    %v459 = vadd.f32 %v449, 0.0
    %v460 = vadd.f32 %v450, 0.0
    %v461 = vadd.f32 %v451, 0.0
    %462 = vset.pattern.permute.xlu0 1
    %463 = vperm.xlu0 %462, %v43
    %v464 = vpop.permute.xlu0 %463
    %466 = vset.pattern.permute.xlu0 1
    %467 = vperm.xlu0 %466, %v44
    %v468 = vpop.permute.xlu0 %467
    %v470 = vlaneseq
    %v471 = vshrl.u32 %v470, 7
    %v472 = vsub.s32 1, %v471
    %v473 = vrot.slane %v407, %v472
    %v474 = vlaneseq
    %v475 = vshrl.u32 %v474, 7
    %v476 = vsub.s32 1, %v475
    %v477 = vrot.slane %v408, %v476
    %v478 = vlaneseq
    %v479 = vshrl.u32 %v478, 7
    %v480 = vsub.s32 1, %v479
    %v481 = vrot.slane %v409, %v480
    %v482 = vlaneseq
    %v483 = vshrl.u32 %v482, 7
    %v484 = vsub.s32 1, %v483
    %v485 = vrot.slane %v410, %v484
    %v486 = vlaneseq
    %v487 = vshrl.u32 %v486, 7
    %v488 = vsub.s32 1, %v487
    %v489 = vrot.slane %v411, %v488
    %v490 = vmul.f32 %v464, %v473
    %v491 = vmul.f32 %v464, %v477
    %v492 = vmul.f32 %v464, %v481
    %v493 = vmul.f32 %v464, %v485
    %v494 = vmul.f32 %v464, %v489
    %v495 = vmul.f32 %v468, %v473
    %v496 = vmul.f32 %v468, %v477
    %v497 = vmul.f32 %v468, %v481
    %v498 = vmul.f32 %v468, %v485
    %v499 = vmul.f32 %v468, %v489
    %v500 = vadd.f32 %v452, %v490
    %v501 = vadd.f32 %v453, %v491
    %v502 = vadd.f32 %v454, %v492
    %v503 = vadd.f32 %v455, %v493
    %v504 = vadd.f32 %v456, %v494
    %v505 = vadd.f32 %v457, %v495
    %v506 = vadd.f32 %v458, %v496
    %v507 = vadd.f32 %v459, %v497
    %v508 = vadd.f32 %v460, %v498
    %v509 = vadd.f32 %v461, %v499
    %510 = vset.pattern.permute.xlu0 2
    %511 = vperm.xlu0 %510, %v43
    %v512 = vpop.permute.xlu0 %511
    %514 = vset.pattern.permute.xlu0 2
    %515 = vperm.xlu0 %514, %v44
    %v516 = vpop.permute.xlu0 %515
    %v518 = vlaneseq
    %v519 = vshrl.u32 %v518, 7
    %v520 = vsub.s32 2, %v519
    %v521 = vrot.slane %v407, %v520
    %v522 = vlaneseq
    %v523 = vshrl.u32 %v522, 7
    %v524 = vsub.s32 2, %v523
    %v525 = vrot.slane %v408, %v524
    %v526 = vlaneseq
    %v527 = vshrl.u32 %v526, 7
    %v528 = vsub.s32 2, %v527
    %v529 = vrot.slane %v409, %v528
    %v530 = vlaneseq
    %v531 = vshrl.u32 %v530, 7
    %v532 = vsub.s32 2, %v531
    %v533 = vrot.slane %v410, %v532
    %v534 = vlaneseq
    %v535 = vshrl.u32 %v534, 7
    %v536 = vsub.s32 2, %v535
    %v537 = vrot.slane %v411, %v536
    %v538 = vmul.f32 %v512, %v521
    %v539 = vmul.f32 %v512, %v525
    %v540 = vmul.f32 %v512, %v529
    %v541 = vmul.f32 %v512, %v533
    %v542 = vmul.f32 %v512, %v537
    %v543 = vmul.f32 %v516, %v521
    %v544 = vmul.f32 %v516, %v525
    %v545 = vmul.f32 %v516, %v529
    %v546 = vmul.f32 %v516, %v533
    %v547 = vmul.f32 %v516, %v537
    %v548 = vadd.f32 %v500, %v538
    %v549 = vadd.f32 %v501, %v539
    %v550 = vadd.f32 %v502, %v540
    %v551 = vadd.f32 %v503, %v541
    %v552 = vadd.f32 %v504, %v542
    %v553 = vadd.f32 %v505, %v543
    %v554 = vadd.f32 %v506, %v544
    %v555 = vadd.f32 %v507, %v545
    %v556 = vadd.f32 %v508, %v546
    %v557 = vadd.f32 %v509, %v547
    %558 = vset.pattern.permute.xlu0 3
    %559 = vperm.xlu0 %558, %v43
    %v560 = vpop.permute.xlu0 %559
    %562 = vset.pattern.permute.xlu0 3
    %563 = vperm.xlu0 %562, %v44
    %v564 = vpop.permute.xlu0 %563
    %v566 = vlaneseq
    %v567 = vshrl.u32 %v566, 7
    %v568 = vsub.s32 3, %v567
    %v569 = vrot.slane %v407, %v568
    %v570 = vlaneseq
    %v571 = vshrl.u32 %v570, 7
    %v572 = vsub.s32 3, %v571
    %v573 = vrot.slane %v408, %v572
    %v574 = vlaneseq
    %v575 = vshrl.u32 %v574, 7
    %v576 = vsub.s32 3, %v575
    %v577 = vrot.slane %v409, %v576
    %v578 = vlaneseq
    %v579 = vshrl.u32 %v578, 7
    %v580 = vsub.s32 3, %v579
    %v581 = vrot.slane %v410, %v580
    %v582 = vlaneseq
    %v583 = vshrl.u32 %v582, 7
    %v584 = vsub.s32 3, %v583
    %v585 = vrot.slane %v411, %v584
    %v586 = vmul.f32 %v560, %v569
    %v587 = vmul.f32 %v560, %v573
    %v588 = vmul.f32 %v560, %v577
    %v589 = vmul.f32 %v560, %v581
    %v590 = vmul.f32 %v560, %v585
    %v591 = vmul.f32 %v564, %v569
    %v592 = vmul.f32 %v564, %v573
    %v593 = vmul.f32 %v564, %v577
    %v594 = vmul.f32 %v564, %v581
    %v595 = vmul.f32 %v564, %v585
    %v596 = vadd.f32 %v548, %v586
    %v597 = vadd.f32 %v549, %v587
    %v598 = vadd.f32 %v550, %v588
    %v599 = vadd.f32 %v551, %v589
    %v600 = vadd.f32 %v552, %v590
    %v601 = vadd.f32 %v553, %v591
    %v602 = vadd.f32 %v554, %v592
    %v603 = vadd.f32 %v555, %v593
    %v604 = vadd.f32 %v556, %v594
    %v605 = vadd.f32 %v557, %v595
    %606 = vset.pattern.permute.xlu0 4
    %607 = vperm.xlu0 %606, %v43
    %v608 = vpop.permute.xlu0 %607
    %610 = vset.pattern.permute.xlu0 4
    %611 = vperm.xlu0 %610, %v44
    %v612 = vpop.permute.xlu0 %611
    %v614 = vlaneseq
    %v615 = vshrl.u32 %v614, 7
    %v616 = vsub.s32 4, %v615
    %v617 = vrot.slane %v407, %v616
    %v618 = vlaneseq
    %v619 = vshrl.u32 %v618, 7
    %v620 = vsub.s32 4, %v619
    %v621 = vrot.slane %v408, %v620
    %v622 = vlaneseq
    %v623 = vshrl.u32 %v622, 7
    %v624 = vsub.s32 4, %v623
    %v625 = vrot.slane %v409, %v624
    %v626 = vlaneseq
    %v627 = vshrl.u32 %v626, 7
    %v628 = vsub.s32 4, %v627
    %v629 = vrot.slane %v410, %v628
    %v630 = vlaneseq
    %v631 = vshrl.u32 %v630, 7
    %v632 = vsub.s32 4, %v631
    %v633 = vrot.slane %v411, %v632
    %v634 = vmul.f32 %v608, %v617
    %v635 = vmul.f32 %v608, %v621
    %v636 = vmul.f32 %v608, %v625
    %v637 = vmul.f32 %v608, %v629
    %v638 = vmul.f32 %v608, %v633
    %v639 = vmul.f32 %v612, %v617
    %v640 = vmul.f32 %v612, %v621
    %v641 = vmul.f32 %v612, %v625
    %v642 = vmul.f32 %v612, %v629
    %v643 = vmul.f32 %v612, %v633
    %v644 = vadd.f32 %v596, %v634
    %v645 = vadd.f32 %v597, %v635
    %v646 = vadd.f32 %v598, %v636
    %v647 = vadd.f32 %v599, %v637
    %v648 = vadd.f32 %v600, %v638
    %v649 = vadd.f32 %v601, %v639
    %v650 = vadd.f32 %v602, %v640
    %v651 = vadd.f32 %v603, %v641
    %v652 = vadd.f32 %v604, %v642
    %v653 = vadd.f32 %v605, %v643
    %654 = vset.pattern.permute.xlu0 5
    %655 = vperm.xlu0 %654, %v43
    %v656 = vpop.permute.xlu0 %655
    %658 = vset.pattern.permute.xlu0 5
    %659 = vperm.xlu0 %658, %v44
    %v660 = vpop.permute.xlu0 %659
    %v662 = vlaneseq
    %v663 = vshrl.u32 %v662, 7
    %v664 = vsub.s32 5, %v663
    %v665 = vrot.slane %v407, %v664
    %v666 = vlaneseq
    %v667 = vshrl.u32 %v666, 7
    %v668 = vsub.s32 5, %v667
    %v669 = vrot.slane %v408, %v668
    %v670 = vlaneseq
    %v671 = vshrl.u32 %v670, 7
    %v672 = vsub.s32 5, %v671
    %v673 = vrot.slane %v409, %v672
    %v674 = vlaneseq
    %v675 = vshrl.u32 %v674, 7
    %v676 = vsub.s32 5, %v675
    %v677 = vrot.slane %v410, %v676
    %v678 = vlaneseq
    %v679 = vshrl.u32 %v678, 7
    %v680 = vsub.s32 5, %v679
    %v681 = vrot.slane %v411, %v680
    %v682 = vmul.f32 %v656, %v665
    %v683 = vmul.f32 %v656, %v669
    %v684 = vmul.f32 %v656, %v673
    %v685 = vmul.f32 %v656, %v677
    %v686 = vmul.f32 %v656, %v681
    %v687 = vmul.f32 %v660, %v665
    %v688 = vmul.f32 %v660, %v669
    %v689 = vmul.f32 %v660, %v673
    %v690 = vmul.f32 %v660, %v677
    %v691 = vmul.f32 %v660, %v681
    %v692 = vadd.f32 %v644, %v682
    %v693 = vadd.f32 %v645, %v683
    %v694 = vadd.f32 %v646, %v684
    %v695 = vadd.f32 %v647, %v685
    %v696 = vadd.f32 %v648, %v686
    %v697 = vadd.f32 %v649, %v687
    %v698 = vadd.f32 %v650, %v688
    %v699 = vadd.f32 %v651, %v689
    %v700 = vadd.f32 %v652, %v690
    %v701 = vadd.f32 %v653, %v691
    %707 = vrot.lane.b32.xlu0 %v692, 127
    %v708 = vpop.permute.xlu0 %707
    %709 = vrot.lane.b32.xlu0 %v693, 127
    %v710 = vpop.permute.xlu0 %709
    %711 = vrot.lane.b32.xlu0 %v694, 127
    %v712 = vpop.permute.xlu0 %711
    %713 = vrot.lane.b32.xlu0 %v695, 127
    %v714 = vpop.permute.xlu0 %713
    %715 = vrot.lane.b32.xlu0 %v696, 127
    %v716 = vpop.permute.xlu0 %715
    %vm717 = vcmask 1039360
    %v718 = vsel %vm717, %v708, %v710
    %v719 = vsel %vm717, %v710, %v712
    %v720 = vsel %vm717, %v712, %v714
    %v721 = vsel %vm717, %v714, %v716
    %726 = vrot.lane.b32.xlu0 %v692, 126
    %v727 = vpop.permute.xlu0 %726
    %728 = vrot.lane.b32.xlu0 %v693, 126
    %v729 = vpop.permute.xlu0 %728
    %730 = vrot.lane.b32.xlu0 %v694, 126
    %v731 = vpop.permute.xlu0 %730
    %732 = vrot.lane.b32.xlu0 %v695, 126
    %v733 = vpop.permute.xlu0 %732
    %734 = vrot.lane.b32.xlu0 %v696, 126
    %v735 = vpop.permute.xlu0 %734
    %vm736 = vcmask 1031168
    %v737 = vsel %vm736, %v727, %v729
    %v738 = vsel %vm736, %v729, %v731
    %v739 = vsel %vm736, %v731, %v733
    %v740 = vsel %vm736, %v733, %v735
    %745 = vrot.lane.b32.xlu0 %v692, 112
    %v746 = vpop.permute.xlu0 %745
    %747 = vrot.lane.b32.xlu0 %v693, 112
    %v748 = vpop.permute.xlu0 %747
    %749 = vrot.lane.b32.xlu0 %v694, 112
    %v750 = vpop.permute.xlu0 %749
    %751 = vrot.lane.b32.xlu0 %v695, 112
    %v752 = vpop.permute.xlu0 %751
    %753 = vrot.lane.b32.xlu0 %v696, 112
    %v754 = vpop.permute.xlu0 %753
    %vm755 = vcmask 916480
    %v756 = vsel %vm755, %v746, %v748
    %v757 = vsel %vm755, %v748, %v750
    %v758 = vsel %vm755, %v750, %v752
    %v759 = vsel %vm755, %v752, %v754
    %764 = vrot.lane.b32.xlu0 %v692, 111
    %v765 = vpop.permute.xlu0 %764
    %766 = vrot.lane.b32.xlu0 %v693, 111
    %v767 = vpop.permute.xlu0 %766
    %768 = vrot.lane.b32.xlu0 %v694, 111
    %v769 = vpop.permute.xlu0 %768
    %770 = vrot.lane.b32.xlu0 %v695, 111
    %v771 = vpop.permute.xlu0 %770
    %772 = vrot.lane.b32.xlu0 %v696, 111
    %v773 = vpop.permute.xlu0 %772
    %vm774 = vcmask 908288
    %v775 = vsel %vm774, %v765, %v767
    %v776 = vsel %vm774, %v767, %v769
    %v777 = vsel %vm774, %v769, %v771
    %v778 = vsel %vm774, %v771, %v773
    %783 = vrot.lane.b32.xlu0 %v692, 110
    %v784 = vpop.permute.xlu0 %783
    %785 = vrot.lane.b32.xlu0 %v693, 110
    %v786 = vpop.permute.xlu0 %785
    %787 = vrot.lane.b32.xlu0 %v694, 110
    %v788 = vpop.permute.xlu0 %787
    %789 = vrot.lane.b32.xlu0 %v695, 110
    %v790 = vpop.permute.xlu0 %789
    %791 = vrot.lane.b32.xlu0 %v696, 110
    %v792 = vpop.permute.xlu0 %791
    %vm793 = vcmask 900096
    %v794 = vsel %vm793, %v784, %v786
    %v795 = vsel %vm793, %v786, %v788
    %v796 = vsel %vm793, %v788, %v790
    %v797 = vsel %vm793, %v790, %v792
    %802 = vrot.lane.b32.xlu0 %v692, 96
    %v803 = vpop.permute.xlu0 %802
    %804 = vrot.lane.b32.xlu0 %v693, 96
    %v805 = vpop.permute.xlu0 %804
    %806 = vrot.lane.b32.xlu0 %v694, 96
    %v807 = vpop.permute.xlu0 %806
    %808 = vrot.lane.b32.xlu0 %v695, 96
    %v809 = vpop.permute.xlu0 %808
    %810 = vrot.lane.b32.xlu0 %v696, 96
    %v811 = vpop.permute.xlu0 %810
    %vm812 = vcmask 785408
    %v813 = vsel %vm812, %v803, %v805
    %v814 = vsel %vm812, %v805, %v807
    %v815 = vsel %vm812, %v807, %v809
    %v816 = vsel %vm812, %v809, %v811
    %821 = vrot.lane.b32.xlu0 %v692, 95
    %v822 = vpop.permute.xlu0 %821
    %823 = vrot.lane.b32.xlu0 %v693, 95
    %v824 = vpop.permute.xlu0 %823
    %825 = vrot.lane.b32.xlu0 %v694, 95
    %v826 = vpop.permute.xlu0 %825
    %827 = vrot.lane.b32.xlu0 %v695, 95
    %v828 = vpop.permute.xlu0 %827
    %829 = vrot.lane.b32.xlu0 %v696, 95
    %v830 = vpop.permute.xlu0 %829
    %vm831 = vcmask 777216
    %v832 = vsel %vm831, %v822, %v824
    %v833 = vsel %vm831, %v824, %v826
    %v834 = vsel %vm831, %v826, %v828
    %v835 = vsel %vm831, %v828, %v830
    %845 = vrot.lane.b32.xlu0 %v697, 94
    %v846 = vpop.permute.xlu0 %845
    %847 = vrot.lane.b32.xlu0 %v698, 94
    %v848 = vpop.permute.xlu0 %847
    %849 = vrot.lane.b32.xlu0 %v699, 94
    %v850 = vpop.permute.xlu0 %849
    %851 = vrot.lane.b32.xlu0 %v700, 94
    %v852 = vpop.permute.xlu0 %851
    %853 = vrot.lane.b32.xlu0 %v701, 94
    %v854 = vpop.permute.xlu0 %853
    %vm855 = vcmask 769024
    %v856 = vsel %vm855, %v846, %v848
    %v857 = vsel %vm855, %v848, %v850
    %v858 = vsel %vm855, %v850, %v852
    %v859 = vsel %vm855, %v852, %v854
    %v864 = vsel %vm310, %v692, %v718
    %v865 = vsel %vm310, %v693, %v719
    %v866 = vsel %vm310, %v694, %v720
    %v867 = vsel %vm310, %v695, %v721
    %v868 = vsel %vm388, %v864, %v737
    %v869 = vsel %vm388, %v865, %v738
    %v870 = vsel %vm388, %v866, %v739
    %v871 = vsel %vm388, %v867, %v740
    %v872 = vsel %vm394, %v868, %v756
    %v873 = vsel %vm394, %v869, %v757
    %v874 = vsel %vm394, %v870, %v758
    %v875 = vsel %vm394, %v871, %v759
    %v876 = vsel %vm400, %v872, %v775
    %v877 = vsel %vm400, %v873, %v776
    %v878 = vsel %vm400, %v874, %v777
    %v879 = vsel %vm400, %v875, %v778
    %v880 = vsel %vm406, %v876, %v794
    %v881 = vsel %vm406, %v877, %v795
    %v882 = vsel %vm406, %v878, %v796
    %v883 = vsel %vm406, %v879, %v797
    %vm884 = vcmask 1045504
    %v885 = vsel %vm884, %v880, %v813
    %v886 = vsel %vm884, %v881, %v814
    %v887 = vsel %vm884, %v882, %v815
    %v888 = vsel %vm884, %v883, %v816
    %vm889 = vcmask 1046528
    %v890 = vsel %vm889, %v885, %v832
    %v891 = vsel %vm889, %v886, %v833
    %v892 = vsel %vm889, %v887, %v834
    %v893 = vsel %vm889, %v888, %v835
    %v894 = vmul.f32 %v890, %v45
    %v895 = vmul.f32 %v891, %v46
    %v896 = vmul.f32 %v892, %v47
    %v897 = vmul.f32 %v893, %v48
    %v898 = vmul.f32 %v856, %v49
    %v899 = vmul.f32 %v857, %v50
    %v900 = vmul.f32 %v858, %v51
    %v901 = vmul.f32 %v859, %v52
    %v902 = vsel %vm310, %v898, 0.0
    %v903 = vadd.f32 %v894, %v902
    %v904 = vrot.slane %v903, 4
    %v905 = vadd.f32 %v903, %v904
    %v906 = vrot.slane %v905, 2
    %v907 = vadd.f32 %v905, %v906
    %v908 = vrot.slane %v907, 1
    %v909 = vadd.f32 %v907, %v908
    %v910 = vsel %vm310, %v899, 0.0
    %v911 = vadd.f32 %v895, %v910
    %v912 = vrot.slane %v911, 4
    %v913 = vadd.f32 %v911, %v912
    %v914 = vrot.slane %v913, 2
    %v915 = vadd.f32 %v913, %v914
    %v916 = vrot.slane %v915, 1
    %v917 = vadd.f32 %v915, %v916
    %v918 = vsel %vm310, %v900, 0.0
    %v919 = vadd.f32 %v896, %v918
    %v920 = vrot.slane %v919, 4
    %v921 = vadd.f32 %v919, %v920
    %v922 = vrot.slane %v921, 2
    %v923 = vadd.f32 %v921, %v922
    %v924 = vrot.slane %v923, 1
    %v925 = vadd.f32 %v923, %v924
    %v926 = vsel %vm310, %v901, 0.0
    %v927 = vadd.f32 %v897, %v926
    %v928 = vrot.slane %v927, 4
    %v929 = vadd.f32 %v927, %v928
    %v930 = vrot.slane %v929, 2
    %v931 = vadd.f32 %v929, %v930
    %v932 = vrot.slane %v931, 1
    %v933 = vadd.f32 %v931, %v932
    %v934 = vsub.f32 0.0, %v909
    %v935 = vsub.f32 0.0, %v917
    %v936 = vsub.f32 0.0, %v925
    %v937 = vsub.f32 0.0, %v933
    %v938 = vmul.f32 %v934, 1.442695
    %v939 = vpow.pop %v938
    %v940 = vmul.f32 %v935, 1.442695
    %v941 = vpow.pop %v940
    %v942 = vmul.f32 %v936, 1.442695
    %v943 = vpow.pop %v942
    %v944 = vmul.f32 %v937, 1.442695
    %v945 = vpow.pop %v944
    %v946 = vadd.f32 %v939, 1.0
    %v947 = vadd.f32 %v941, 1.0
    %v948 = vadd.f32 %v943, 1.0
    %v949 = vadd.f32 %v945, 1.0
    %v950 = vrcp.pop %v946
    %v951 = vmul.f32 1.0, %v950
    %v952 = vrcp.pop %v947
    %v953 = vmul.f32 1.0, %v952
    %v954 = vrcp.pop %v948
    %v955 = vmul.f32 1.0, %v954
    %v956 = vrcp.pop %v949
    %v957 = vmul.f32 1.0, %v956
    %v958 = vmul.f32 %v218, %v951
    %v959 = vmul.f32 %v219, %v953
    %v960 = vmul.f32 %v220, %v955
    %v961 = vmul.f32 %v221, %v957
    %v962 = vmul.f32 %v222, %v951
    %v963 = vmul.f32 %v223, %v953
    %v964 = vmul.f32 %v224, %v955
    %v965 = vmul.f32 %v225, %v957
    %v966 = vmul.f32 %v226, %v951
    %v967 = vmul.f32 %v227, %v953
    %v968 = vmul.f32 %v228, %v955
    %v969 = vmul.f32 %v229, %v957
    %v970 = vmul.f32 %v230, %v951
    %v971 = vmul.f32 %v231, %v953
    %v972 = vmul.f32 %v232, %v955
    %v973 = vmul.f32 %v233, %v957
    %974 = vst [vmem:[#allocation5] sm:$0xff] %v958
    %975 = vst [vmem:[#allocation5 + $0x8] sm:$0xff] %v959
    %976 = vst [vmem:[#allocation5 + $0x10] sm:$0xff] %v960
    %977 = vst [vmem:[#allocation5 + $0x18] sm:$0xff] %v961
    %978 = vst [vmem:[#allocation5 + $0x20] sm:$0xff] %v962
    %979 = vst [vmem:[#allocation5 + $0x28] sm:$0xff] %v963
    %980 = vst [vmem:[#allocation5 + $0x30] sm:$0xff] %v964
    %981 = vst [vmem:[#allocation5 + $0x38] sm:$0xff] %v965
    %982 = vst [vmem:[#allocation5 + $0x40] sm:$0xff] %v966
    %983 = vst [vmem:[#allocation5 + $0x48] sm:$0xff] %v967
    %984 = vst [vmem:[#allocation5 + $0x50] sm:$0xff] %v968
    %985 = vst [vmem:[#allocation5 + $0x58] sm:$0xff] %v969
    %986 = vst [vmem:[#allocation5 + $0x60] sm:$0xff] %v970
    %987 = vst [vmem:[#allocation5 + $0x68] sm:$0xff] %v971
    %988 = vst [vmem:[#allocation5 + $0x70] sm:$0xff] %v972
    %989 = vst [vmem:[#allocation5 + $0x78] sm:$0xff] %v973
    %s990 = scalar_lea.vmem [#allocation2], 128
    %v991 = vld [vmem:[%s990] sm:$0xff]
    %v992 = vld [vmem:[%s990 + $0x8] sm:$0xff]
    %v993 = vld [vmem:[%s990 + $0x10] sm:$0xff]
    %v994 = vld [vmem:[%s990 + $0x18] sm:$0xff]
    %v995 = vld [vmem:[%s990 + $0x20] sm:$0xff]
    %v996 = vld [vmem:[%s990 + $0x28] sm:$0xff]
    %v997 = vld [vmem:[%s990 + $0x30] sm:$0xff]
    %v998 = vld [vmem:[%s990 + $0x38] sm:$0xff]
    %v999 = vld [vmem:[%s990 + $0x40] sm:$0xff]
    %v1000 = vld [vmem:[%s990 + $0x48] sm:$0xff]
    %v1001 = vld [vmem:[%s990 + $0x50] sm:$0xff]
    %v1002 = vld [vmem:[%s990 + $0x58] sm:$0xff]
    %v1003 = vld [vmem:[%s990 + $0x60] sm:$0xff]
    %v1004 = vld [vmem:[%s990 + $0x68] sm:$0xff]
    %v1005 = vld [vmem:[%s990 + $0x70] sm:$0xff]
    %v1006 = vld [vmem:[%s990 + $0x78] sm:$0xff]
    %v1007 = vadd.f32 %v991, %v992
    %v1008 = vadd.f32 %v1007, %v993
    %v1009 = vadd.f32 %v1008, %v994
    %1010 = vadd.xlane.f32.xlu0 %v1009
    %v1011 = vpop.xlane.xlu0 %1010
    %v1012 = vadd.f32 %v995, %v996
    %v1013 = vadd.f32 %v1012, %v997
    %v1014 = vadd.f32 %v1013, %v998
    %1015 = vadd.xlane.f32.xlu0 %v1014
    %v1016 = vpop.xlane.xlu0 %1015
    %v1017 = vadd.f32 %v999, %v1000
    %v1018 = vadd.f32 %v1017, %v1001
    %v1019 = vadd.f32 %v1018, %v1002
    %1020 = vadd.xlane.f32.xlu0 %v1019
    %v1021 = vpop.xlane.xlu0 %1020
    %v1022 = vadd.f32 %v1003, %v1004
    %v1023 = vadd.f32 %v1022, %v1005
    %v1024 = vadd.f32 %v1023, %v1006
    %1025 = vadd.xlane.f32.xlu0 %v1024
    %v1026 = vpop.xlane.xlu0 %1025
    %v1027 = vmax.f32 %v991, %v992
    %v1028 = vmax.f32 %v1027, %v993
    %v1029 = vmax.f32 %v1028, %v994
    %1030 = vmax.xlane.f32.xlu0 %v1029
    %v1031 = vpop.xlane.xlu0 %1030
    %v1032 = vmax.f32 %v995, %v996
    %v1033 = vmax.f32 %v1032, %v997
    %v1034 = vmax.f32 %v1033, %v998
    %1035 = vmax.xlane.f32.xlu0 %v1034
    %v1036 = vpop.xlane.xlu0 %1035
    %v1037 = vmax.f32 %v999, %v1000
    %v1038 = vmax.f32 %v1037, %v1001
    %v1039 = vmax.f32 %v1038, %v1002
    %1040 = vmax.xlane.f32.xlu0 %v1039
    %v1041 = vpop.xlane.xlu0 %1040
    %v1042 = vmax.f32 %v1003, %v1004
    %v1043 = vmax.f32 %v1042, %v1005
    %v1044 = vmax.f32 %v1043, %v1006
    %1045 = vmax.xlane.f32.xlu0 %v1044
    %v1046 = vpop.xlane.xlu0 %1045
    %v1047 = vmul.f32 %v1011, 0.001953125
    %v1048 = vmul.f32 %v1016, 0.001953125
    %v1049 = vmul.f32 %v1021, 0.001953125
    %v1050 = vmul.f32 %v1026, 0.001953125
    %v1051 = vmul.f32 %v35, %v1047
    %v1052 = vmul.f32 %v36, %v1048
    %v1053 = vmul.f32 %v37, %v1049
    %v1054 = vmul.f32 %v38, %v1050
    %v1055 = vsel %vm117, %v1051, 0.0
    %v1056 = vsel %vm117, %v1052, 0.0
    %v1057 = vadd.f32 %v1055, %v1056
    %v1058 = vsel %vm117, %v1053, 0.0
    %v1059 = vadd.f32 %v1057, %v1058
    %v1060 = vsel %vm117, %v1054, 0.0
    %v1061 = vadd.f32 %v1059, %v1060
    %v1062 = vrot.slane %v1061, 4
    %v1063 = vadd.f32 %v1061, %v1062
    %v1064 = vrot.slane %v1063, 2
    %v1065 = vadd.f32 %v1063, %v1064
    %v1066 = vrot.slane %v1065, 1
    %v1067 = vadd.f32 %v1065, %v1066
    %vm1068 = vcmp.gt.f32.partialorder %v1067, 0.0
    %v1069 = vmul.f32 %v1067, 1.442695
    %v1070 = vpow.pop %v1069
    %v1071 = vsub.f32 %v1070, 1.0
    %v1072 = vsel %vm1068, %v1067, %v1071
    %v1073 = vmul.f32 %v39, %v1072
    %v1074 = vmul.f32 %v40, %v1072
    %v1075 = vmul.f32 %v41, %v1072
    %v1076 = vmul.f32 %v42, %v1072
    %v1077 = vsel %vm117, %v1073, 0.0
    %1078 = vadd.xlane.f32.xlu0 %v1077
    %v1079 = vpop.xlane.xlu0 %1078
    %v1080 = vsel %vm117, %v1074, 0.0
    %1081 = vadd.xlane.f32.xlu0 %v1080
    %v1082 = vpop.xlane.xlu0 %1081
    %v1083 = vsel %vm117, %v1075, 0.0
    %1084 = vadd.xlane.f32.xlu0 %v1083
    %v1085 = vpop.xlane.xlu0 %1084
    %v1086 = vsel %vm117, %v1076, 0.0
    %1087 = vadd.xlane.f32.xlu0 %v1086
    %v1088 = vpop.xlane.xlu0 %1087
    %v1089 = vmul.f32 %v35, %v1031
    %v1090 = vmul.f32 %v36, %v1036
    %v1091 = vmul.f32 %v37, %v1041
    %v1092 = vmul.f32 %v38, %v1046
    %v1093 = vsel %vm117, %v1089, 0.0
    %v1094 = vsel %vm117, %v1090, 0.0
    %v1095 = vadd.f32 %v1093, %v1094
    %v1096 = vsel %vm117, %v1091, 0.0
    %v1097 = vadd.f32 %v1095, %v1096
    %v1098 = vsel %vm117, %v1092, 0.0
    %v1099 = vadd.f32 %v1097, %v1098
    %v1100 = vrot.slane %v1099, 4
    %v1101 = vadd.f32 %v1099, %v1100
    %v1102 = vrot.slane %v1101, 2
    %v1103 = vadd.f32 %v1101, %v1102
    %v1104 = vrot.slane %v1103, 1
    %v1105 = vadd.f32 %v1103, %v1104
    %vm1106 = vcmp.gt.f32.partialorder %v1105, 0.0
    %v1107 = vmul.f32 %v1105, 1.442695
    %v1108 = vpow.pop %v1107
    %v1109 = vsub.f32 %v1108, 1.0
    %v1110 = vsel %vm1106, %v1105, %v1109
    %v1111 = vmul.f32 %v39, %v1110
    %v1112 = vmul.f32 %v40, %v1110
    %v1113 = vmul.f32 %v41, %v1110
    %v1114 = vmul.f32 %v42, %v1110
    %v1115 = vsel %vm117, %v1111, 0.0
    %1116 = vadd.xlane.f32.xlu0 %v1115
    %v1117 = vpop.xlane.xlu0 %1116
    %v1118 = vsel %vm117, %v1112, 0.0
    %1119 = vadd.xlane.f32.xlu0 %v1118
    %v1120 = vpop.xlane.xlu0 %1119
    %v1121 = vsel %vm117, %v1113, 0.0
    %1122 = vadd.xlane.f32.xlu0 %v1121
    %v1123 = vpop.xlane.xlu0 %1122
    %v1124 = vsel %vm117, %v1114, 0.0
    %1125 = vadd.xlane.f32.xlu0 %v1124
    %v1126 = vpop.xlane.xlu0 %1125
    %v1127 = vadd.f32 %v1079, %v1117
    %v1128 = vadd.f32 %v1082, %v1120
    %v1129 = vadd.f32 %v1085, %v1123
    %v1130 = vadd.f32 %v1088, %v1126
    %v1131 = vsub.f32 0.0, %v1127
    %v1132 = vsub.f32 0.0, %v1128
    %v1133 = vsub.f32 0.0, %v1129
    %v1134 = vsub.f32 0.0, %v1130
    %v1135 = vmul.f32 %v1131, 1.442695
    %v1136 = vpow.pop %v1135
    %v1137 = vmul.f32 %v1132, 1.442695
    %v1138 = vpow.pop %v1137
    %v1139 = vmul.f32 %v1133, 1.442695
    %v1140 = vpow.pop %v1139
    %v1141 = vmul.f32 %v1134, 1.442695
    %v1142 = vpow.pop %v1141
    %v1143 = vadd.f32 %v1136, 1.0
    %v1144 = vadd.f32 %v1138, 1.0
    %v1145 = vadd.f32 %v1140, 1.0
    %v1146 = vadd.f32 %v1142, 1.0
    %v1147 = vrcp.pop %v1143
    %v1148 = vmul.f32 1.0, %v1147
    %v1149 = vrcp.pop %v1144
    %v1150 = vmul.f32 1.0, %v1149
    %v1151 = vrcp.pop %v1145
    %v1152 = vmul.f32 1.0, %v1151
    %v1153 = vrcp.pop %v1146
    %v1154 = vmul.f32 1.0, %v1153
    %v1155 = vmul.f32 %v991, %v1148
    %v1156 = vmul.f32 %v992, %v1148
    %v1157 = vmul.f32 %v993, %v1148
    %v1158 = vmul.f32 %v994, %v1148
    %v1159 = vmul.f32 %v995, %v1150
    %v1160 = vmul.f32 %v996, %v1150
    %v1161 = vmul.f32 %v997, %v1150
    %v1162 = vmul.f32 %v998, %v1150
    %v1163 = vmul.f32 %v999, %v1152
    %v1164 = vmul.f32 %v1000, %v1152
    %v1165 = vmul.f32 %v1001, %v1152
    %v1166 = vmul.f32 %v1002, %v1152
    %v1167 = vmul.f32 %v1003, %v1154
    %v1168 = vmul.f32 %v1004, %v1154
    %v1169 = vmul.f32 %v1005, %v1154
    %v1170 = vmul.f32 %v1006, %v1154
    %v1171 = vmax.f32 %v1155, %v1159
    %v1172 = vmax.f32 %v1171, %v1163
    %v1173 = vmax.f32 %v1172, %v1167
    %v1174 = vrot.slane %v1173, 4
    %v1175 = vmax.f32 %v1173, %v1174
    %v1176 = vrot.slane %v1175, 2
    %v1177 = vmax.f32 %v1175, %v1176
    %v1178 = vrot.slane %v1177, 1
    %v1179 = vmax.f32 %v1177, %v1178
    %v1180 = vmax.f32 %v1156, %v1160
    %v1181 = vmax.f32 %v1180, %v1164
    %v1182 = vmax.f32 %v1181, %v1168
    %v1183 = vrot.slane %v1182, 4
    %v1184 = vmax.f32 %v1182, %v1183
    %v1185 = vrot.slane %v1184, 2
    %v1186 = vmax.f32 %v1184, %v1185
    %v1187 = vrot.slane %v1186, 1
    %v1188 = vmax.f32 %v1186, %v1187
    %v1189 = vmax.f32 %v1157, %v1161
    %v1190 = vmax.f32 %v1189, %v1165
    %v1191 = vmax.f32 %v1190, %v1169
    %v1192 = vrot.slane %v1191, 4
    %v1193 = vmax.f32 %v1191, %v1192
    %v1194 = vrot.slane %v1193, 2
    %v1195 = vmax.f32 %v1193, %v1194
    %v1196 = vrot.slane %v1195, 1
    %v1197 = vmax.f32 %v1195, %v1196
    %v1198 = vmax.f32 %v1158, %v1162
    %v1199 = vmax.f32 %v1198, %v1166
    %v1200 = vmax.f32 %v1199, %v1170
    %v1201 = vrot.slane %v1200, 4
    %v1202 = vmax.f32 %v1200, %v1201
    %v1203 = vrot.slane %v1202, 2
    %v1204 = vmax.f32 %v1202, %v1203
    %v1205 = vrot.slane %v1204, 1
    %v1206 = vmax.f32 %v1204, %v1205
    %v1207 = vadd.f32 %v1155, %v1159
    %v1208 = vadd.f32 %v1207, %v1163
    %v1209 = vadd.f32 %v1208, %v1167
    %v1210 = vrot.slane %v1209, 4
    %v1211 = vadd.f32 %v1209, %v1210
    %v1212 = vrot.slane %v1211, 2
    %v1213 = vadd.f32 %v1211, %v1212
    %v1214 = vrot.slane %v1213, 1
    %v1215 = vadd.f32 %v1213, %v1214
    %v1216 = vadd.f32 %v1156, %v1160
    %v1217 = vadd.f32 %v1216, %v1164
    %v1218 = vadd.f32 %v1217, %v1168
    %v1219 = vrot.slane %v1218, 4
    %v1220 = vadd.f32 %v1218, %v1219
    %v1221 = vrot.slane %v1220, 2
    %v1222 = vadd.f32 %v1220, %v1221
    %v1223 = vrot.slane %v1222, 1
    %v1224 = vadd.f32 %v1222, %v1223
    %v1225 = vadd.f32 %v1157, %v1161
    %v1226 = vadd.f32 %v1225, %v1165
    %v1227 = vadd.f32 %v1226, %v1169
    %v1228 = vrot.slane %v1227, 4
    %v1229 = vadd.f32 %v1227, %v1228
    %v1230 = vrot.slane %v1229, 2
    %v1231 = vadd.f32 %v1229, %v1230
    %v1232 = vrot.slane %v1231, 1
    %v1233 = vadd.f32 %v1231, %v1232
    %v1234 = vadd.f32 %v1158, %v1162
    %v1235 = vadd.f32 %v1234, %v1166
    %v1236 = vadd.f32 %v1235, %v1170
    %v1237 = vrot.slane %v1236, 4
    %v1238 = vadd.f32 %v1236, %v1237
    %v1239 = vrot.slane %v1238, 2
    %v1240 = vadd.f32 %v1238, %v1239
    %v1241 = vrot.slane %v1240, 1
    %v1242 = vadd.f32 %v1240, %v1241
    %v1243 = vmul.f32 %v1215, 0.03125
    %v1244 = vmul.f32 %v1224, 0.03125
    %v1245 = vmul.f32 %v1233, 0.03125
    %v1246 = vmul.f32 %v1242, 0.03125
    %v1247 = vsel %vm310, %v1179, %v1243
    %v1248 = vsel %vm310, %v1188, %v1244
    %v1249 = vsel %vm310, %v1197, %v1245
    %v1250 = vsel %vm310, %v1206, %v1246
    %1255 = vrot.lane.b32.xlu0 %v1247, 17
    %v1256 = vpop.permute.xlu0 %1255
    %1257 = vrot.lane.b32.xlu0 %v1248, 17
    %v1258 = vpop.permute.xlu0 %1257
    %1259 = vrot.lane.b32.xlu0 %v1249, 17
    %v1260 = vpop.permute.xlu0 %1259
    %1261 = vrot.lane.b32.xlu0 %v1250, 17
    %v1262 = vpop.permute.xlu0 %1261
    %v1263 = vsel %vm327, %v1256, %v1258
    %v1264 = vsel %vm327, %v1258, %v1260
    %v1265 = vsel %vm327, %v1260, %v1262
    %v1271 = vsel %vm327, 0.0, %v1256
    %v1272 = vsel %vm327, %v1262, 0.0
    %v1275 = vrot.slane %v1271, 7
    %v1276 = vrot.slane %v1263, 7
    %v1277 = vrot.slane %v1264, 7
    %v1278 = vrot.slane %v1265, 7
    %v1279 = vrot.slane %v1272, 7
    %v1285 = vrot.slane %v1263, 6
    %v1286 = vrot.slane %v1264, 6
    %v1287 = vrot.slane %v1265, 6
    %v1288 = vrot.slane %v1272, 6
    %v1293 = vrot.slane %v1271, 6
    %v1295 = vrot.slane %v1271, 5
    %v1296 = vrot.slane %v1263, 5
    %v1297 = vrot.slane %v1264, 5
    %v1298 = vrot.slane %v1265, 5
    %v1299 = vrot.slane %v1272, 5
    %v1305 = vrot.slane %v1263, 4
    %v1306 = vrot.slane %v1264, 4
    %v1307 = vrot.slane %v1265, 4
    %v1308 = vrot.slane %v1272, 4
    %v1313 = vsel %vm310, 0.0, %v1275
    %v1314 = vsel %vm310, %v1271, %v1276
    %v1315 = vsel %vm310, %v1263, %v1277
    %v1316 = vsel %vm310, %v1264, %v1278
    %v1317 = vsel %vm310, %v1265, %v1279
    %v1318 = vsel %vm388, %v1313, %v1285
    %v1319 = vsel %vm388, %v1314, %v1286
    %v1320 = vsel %vm388, %v1315, %v1287
    %v1321 = vsel %vm388, %v1316, %v1288
    %v1322 = vsel %vm388, %v1317, %v355
    %v1323 = vsel %vm394, %v1318, %v355
    %v1324 = vsel %vm394, %v1319, %v1293
    %v1325 = vsel %vm394, %v1320, %v1285
    %v1326 = vsel %vm394, %v1321, %v1286
    %v1327 = vsel %vm394, %v1322, %v1287
    %v1328 = vsel %vm400, %v1323, %v1295
    %v1329 = vsel %vm400, %v1324, %v1296
    %v1330 = vsel %vm400, %v1325, %v1297
    %v1331 = vsel %vm400, %v1326, %v1298
    %v1332 = vsel %vm400, %v1327, %v1299
    %v1333 = vsel %vm406, %v1328, %v1305
    %v1334 = vsel %vm406, %v1329, %v1306
    %v1335 = vsel %vm406, %v1330, %v1307
    %v1336 = vsel %vm406, %v1331, %v1308
    %v1337 = vsel %vm406, %v1332, %v377
    %v1338 = vlaneseq
    %v1339 = vshrl.u32 %v1338, 7
    %v1340 = vsub.s32 0, %v1339
    %v1341 = vrot.slane %v1333, %v1340
    %v1342 = vlaneseq
    %v1343 = vshrl.u32 %v1342, 7
    %v1344 = vsub.s32 0, %v1343
    %v1345 = vrot.slane %v1334, %v1344
    %v1346 = vlaneseq
    %v1347 = vshrl.u32 %v1346, 7
    %v1348 = vsub.s32 0, %v1347
    %v1349 = vrot.slane %v1335, %v1348
    %v1350 = vlaneseq
    %v1351 = vshrl.u32 %v1350, 7
    %v1352 = vsub.s32 0, %v1351
    %v1353 = vrot.slane %v1336, %v1352
    %v1354 = vlaneseq
    %v1355 = vshrl.u32 %v1354, 7
    %v1356 = vsub.s32 0, %v1355
    %v1357 = vrot.slane %v1337, %v1356
    %v1358 = vmul.f32 %v415, %v1341
    %v1359 = vmul.f32 %v415, %v1345
    %v1360 = vmul.f32 %v415, %v1349
    %v1361 = vmul.f32 %v415, %v1353
    %v1362 = vmul.f32 %v415, %v1357
    %v1363 = vmul.f32 %v420, %v1341
    %v1364 = vmul.f32 %v420, %v1345
    %v1365 = vmul.f32 %v420, %v1349
    %v1366 = vmul.f32 %v420, %v1353
    %v1367 = vmul.f32 %v420, %v1357
    %v1368 = vadd.f32 %v1358, 0.0
    %v1369 = vadd.f32 %v1359, 0.0
    %v1370 = vadd.f32 %v1360, 0.0
    %v1371 = vadd.f32 %v1361, 0.0
    %v1372 = vadd.f32 %v1362, 0.0
    %v1373 = vadd.f32 %v1363, 0.0
    %v1374 = vadd.f32 %v1364, 0.0
    %v1375 = vadd.f32 %v1365, 0.0
    %v1376 = vadd.f32 %v1366, 0.0
    %v1377 = vadd.f32 %v1367, 0.0
    %v1378 = vlaneseq
    %v1379 = vshrl.u32 %v1378, 7
    %v1380 = vsub.s32 1, %v1379
    %v1381 = vrot.slane %v1333, %v1380
    %v1382 = vlaneseq
    %v1383 = vshrl.u32 %v1382, 7
    %v1384 = vsub.s32 1, %v1383
    %v1385 = vrot.slane %v1334, %v1384
    %v1386 = vlaneseq
    %v1387 = vshrl.u32 %v1386, 7
    %v1388 = vsub.s32 1, %v1387
    %v1389 = vrot.slane %v1335, %v1388
    %v1390 = vlaneseq
    %v1391 = vshrl.u32 %v1390, 7
    %v1392 = vsub.s32 1, %v1391
    %v1393 = vrot.slane %v1336, %v1392
    %v1394 = vlaneseq
    %v1395 = vshrl.u32 %v1394, 7
    %v1396 = vsub.s32 1, %v1395
    %v1397 = vrot.slane %v1337, %v1396
    %v1398 = vmul.f32 %v464, %v1381
    %v1399 = vmul.f32 %v464, %v1385
    %v1400 = vmul.f32 %v464, %v1389
    %v1401 = vmul.f32 %v464, %v1393
    %v1402 = vmul.f32 %v464, %v1397
    %v1403 = vmul.f32 %v468, %v1381
    %v1404 = vmul.f32 %v468, %v1385
    %v1405 = vmul.f32 %v468, %v1389
    %v1406 = vmul.f32 %v468, %v1393
    %v1407 = vmul.f32 %v468, %v1397
    %v1408 = vadd.f32 %v1368, %v1398
    %v1409 = vadd.f32 %v1369, %v1399
    %v1410 = vadd.f32 %v1370, %v1400
    %v1411 = vadd.f32 %v1371, %v1401
    %v1412 = vadd.f32 %v1372, %v1402
    %v1413 = vadd.f32 %v1373, %v1403
    %v1414 = vadd.f32 %v1374, %v1404
    %v1415 = vadd.f32 %v1375, %v1405
    %v1416 = vadd.f32 %v1376, %v1406
    %v1417 = vadd.f32 %v1377, %v1407
    %v1418 = vlaneseq
    %v1419 = vshrl.u32 %v1418, 7
    %v1420 = vsub.s32 2, %v1419
    %v1421 = vrot.slane %v1333, %v1420
    %v1422 = vlaneseq
    %v1423 = vshrl.u32 %v1422, 7
    %v1424 = vsub.s32 2, %v1423
    %v1425 = vrot.slane %v1334, %v1424
    %v1426 = vlaneseq
    %v1427 = vshrl.u32 %v1426, 7
    %v1428 = vsub.s32 2, %v1427
    %v1429 = vrot.slane %v1335, %v1428
    %v1430 = vlaneseq
    %v1431 = vshrl.u32 %v1430, 7
    %v1432 = vsub.s32 2, %v1431
    %v1433 = vrot.slane %v1336, %v1432
    %v1434 = vlaneseq
    %v1435 = vshrl.u32 %v1434, 7
    %v1436 = vsub.s32 2, %v1435
    %v1437 = vrot.slane %v1337, %v1436
    %v1438 = vmul.f32 %v512, %v1421
    %v1439 = vmul.f32 %v512, %v1425
    %v1440 = vmul.f32 %v512, %v1429
    %v1441 = vmul.f32 %v512, %v1433
    %v1442 = vmul.f32 %v512, %v1437
    %v1443 = vmul.f32 %v516, %v1421
    %v1444 = vmul.f32 %v516, %v1425
    %v1445 = vmul.f32 %v516, %v1429
    %v1446 = vmul.f32 %v516, %v1433
    %v1447 = vmul.f32 %v516, %v1437
    %v1448 = vadd.f32 %v1408, %v1438
    %v1449 = vadd.f32 %v1409, %v1439
    %v1450 = vadd.f32 %v1410, %v1440
    %v1451 = vadd.f32 %v1411, %v1441
    %v1452 = vadd.f32 %v1412, %v1442
    %v1453 = vadd.f32 %v1413, %v1443
    %v1454 = vadd.f32 %v1414, %v1444
    %v1455 = vadd.f32 %v1415, %v1445
    %v1456 = vadd.f32 %v1416, %v1446
    %v1457 = vadd.f32 %v1417, %v1447
    %v1458 = vlaneseq
    %v1459 = vshrl.u32 %v1458, 7
    %v1460 = vsub.s32 3, %v1459
    %v1461 = vrot.slane %v1333, %v1460
    %v1462 = vlaneseq
    %v1463 = vshrl.u32 %v1462, 7
    %v1464 = vsub.s32 3, %v1463
    %v1465 = vrot.slane %v1334, %v1464
    %v1466 = vlaneseq
    %v1467 = vshrl.u32 %v1466, 7
    %v1468 = vsub.s32 3, %v1467
    %v1469 = vrot.slane %v1335, %v1468
    %v1470 = vlaneseq
    %v1471 = vshrl.u32 %v1470, 7
    %v1472 = vsub.s32 3, %v1471
    %v1473 = vrot.slane %v1336, %v1472
    %v1474 = vlaneseq
    %v1475 = vshrl.u32 %v1474, 7
    %v1476 = vsub.s32 3, %v1475
    %v1477 = vrot.slane %v1337, %v1476
    %v1478 = vmul.f32 %v560, %v1461
    %v1479 = vmul.f32 %v560, %v1465
    %v1480 = vmul.f32 %v560, %v1469
    %v1481 = vmul.f32 %v560, %v1473
    %v1482 = vmul.f32 %v560, %v1477
    %v1483 = vmul.f32 %v564, %v1461
    %v1484 = vmul.f32 %v564, %v1465
    %v1485 = vmul.f32 %v564, %v1469
    %v1486 = vmul.f32 %v564, %v1473
    %v1487 = vmul.f32 %v564, %v1477
    %v1488 = vadd.f32 %v1448, %v1478
    %v1489 = vadd.f32 %v1449, %v1479
    %v1490 = vadd.f32 %v1450, %v1480
    %v1491 = vadd.f32 %v1451, %v1481
    %v1492 = vadd.f32 %v1452, %v1482
    %v1493 = vadd.f32 %v1453, %v1483
    %v1494 = vadd.f32 %v1454, %v1484
    %v1495 = vadd.f32 %v1455, %v1485
    %v1496 = vadd.f32 %v1456, %v1486
    %v1497 = vadd.f32 %v1457, %v1487
    %v1498 = vlaneseq
    %v1499 = vshrl.u32 %v1498, 7
    %v1500 = vsub.s32 4, %v1499
    %v1501 = vrot.slane %v1333, %v1500
    %v1502 = vlaneseq
    %v1503 = vshrl.u32 %v1502, 7
    %v1504 = vsub.s32 4, %v1503
    %v1505 = vrot.slane %v1334, %v1504
    %v1506 = vlaneseq
    %v1507 = vshrl.u32 %v1506, 7
    %v1508 = vsub.s32 4, %v1507
    %v1509 = vrot.slane %v1335, %v1508
    %v1510 = vlaneseq
    %v1511 = vshrl.u32 %v1510, 7
    %v1512 = vsub.s32 4, %v1511
    %v1513 = vrot.slane %v1336, %v1512
    %v1514 = vlaneseq
    %v1515 = vshrl.u32 %v1514, 7
    %v1516 = vsub.s32 4, %v1515
    %v1517 = vrot.slane %v1337, %v1516
    %v1518 = vmul.f32 %v608, %v1501
    %v1519 = vmul.f32 %v608, %v1505
    %v1520 = vmul.f32 %v608, %v1509
    %v1521 = vmul.f32 %v608, %v1513
    %v1522 = vmul.f32 %v608, %v1517
    %v1523 = vmul.f32 %v612, %v1501
    %v1524 = vmul.f32 %v612, %v1505
    %v1525 = vmul.f32 %v612, %v1509
    %v1526 = vmul.f32 %v612, %v1513
    %v1527 = vmul.f32 %v612, %v1517
    %v1528 = vadd.f32 %v1488, %v1518
    %v1529 = vadd.f32 %v1489, %v1519
    %v1530 = vadd.f32 %v1490, %v1520
    %v1531 = vadd.f32 %v1491, %v1521
    %v1532 = vadd.f32 %v1492, %v1522
    %v1533 = vadd.f32 %v1493, %v1523
    %v1534 = vadd.f32 %v1494, %v1524
    %v1535 = vadd.f32 %v1495, %v1525
    %v1536 = vadd.f32 %v1496, %v1526
    %v1537 = vadd.f32 %v1497, %v1527
    %v1538 = vlaneseq
    %v1539 = vshrl.u32 %v1538, 7
    %v1540 = vsub.s32 5, %v1539
    %v1541 = vrot.slane %v1333, %v1540
    %v1542 = vlaneseq
    %v1543 = vshrl.u32 %v1542, 7
    %v1544 = vsub.s32 5, %v1543
    %v1545 = vrot.slane %v1334, %v1544
    %v1546 = vlaneseq
    %v1547 = vshrl.u32 %v1546, 7
    %v1548 = vsub.s32 5, %v1547
    %v1549 = vrot.slane %v1335, %v1548
    %v1550 = vlaneseq
    %v1551 = vshrl.u32 %v1550, 7
    %v1552 = vsub.s32 5, %v1551
    %v1553 = vrot.slane %v1336, %v1552
    %v1554 = vlaneseq
    %v1555 = vshrl.u32 %v1554, 7
    %v1556 = vsub.s32 5, %v1555
    %v1557 = vrot.slane %v1337, %v1556
    %v1558 = vmul.f32 %v656, %v1541
    %v1559 = vmul.f32 %v656, %v1545
    %v1560 = vmul.f32 %v656, %v1549
    %v1561 = vmul.f32 %v656, %v1553
    %v1562 = vmul.f32 %v656, %v1557
    %v1563 = vmul.f32 %v660, %v1541
    %v1564 = vmul.f32 %v660, %v1545
    %v1565 = vmul.f32 %v660, %v1549
    %v1566 = vmul.f32 %v660, %v1553
    %v1567 = vmul.f32 %v660, %v1557
    %v1568 = vadd.f32 %v1528, %v1558
    %v1569 = vadd.f32 %v1529, %v1559
    %v1570 = vadd.f32 %v1530, %v1560
    %v1571 = vadd.f32 %v1531, %v1561
    %v1572 = vadd.f32 %v1532, %v1562
    %v1573 = vadd.f32 %v1533, %v1563
    %v1574 = vadd.f32 %v1534, %v1564
    %v1575 = vadd.f32 %v1535, %v1565
    %v1576 = vadd.f32 %v1536, %v1566
    %v1577 = vadd.f32 %v1537, %v1567
    %1583 = vrot.lane.b32.xlu0 %v1568, 127
    %v1584 = vpop.permute.xlu0 %1583
    %1585 = vrot.lane.b32.xlu0 %v1569, 127
    %v1586 = vpop.permute.xlu0 %1585
    %1587 = vrot.lane.b32.xlu0 %v1570, 127
    %v1588 = vpop.permute.xlu0 %1587
    %1589 = vrot.lane.b32.xlu0 %v1571, 127
    %v1590 = vpop.permute.xlu0 %1589
    %1591 = vrot.lane.b32.xlu0 %v1572, 127
    %v1592 = vpop.permute.xlu0 %1591
    %v1593 = vsel %vm717, %v1584, %v1586
    %v1594 = vsel %vm717, %v1586, %v1588
    %v1595 = vsel %vm717, %v1588, %v1590
    %v1596 = vsel %vm717, %v1590, %v1592
    %1601 = vrot.lane.b32.xlu0 %v1568, 126
    %v1602 = vpop.permute.xlu0 %1601
    %1603 = vrot.lane.b32.xlu0 %v1569, 126
    %v1604 = vpop.permute.xlu0 %1603
    %1605 = vrot.lane.b32.xlu0 %v1570, 126
    %v1606 = vpop.permute.xlu0 %1605
    %1607 = vrot.lane.b32.xlu0 %v1571, 126
    %v1608 = vpop.permute.xlu0 %1607
    %1609 = vrot.lane.b32.xlu0 %v1572, 126
    %v1610 = vpop.permute.xlu0 %1609
    %v1611 = vsel %vm736, %v1602, %v1604
    %v1612 = vsel %vm736, %v1604, %v1606
    %v1613 = vsel %vm736, %v1606, %v1608
    %v1614 = vsel %vm736, %v1608, %v1610
    %1619 = vrot.lane.b32.xlu0 %v1568, 112
    %v1620 = vpop.permute.xlu0 %1619
    %1621 = vrot.lane.b32.xlu0 %v1569, 112
    %v1622 = vpop.permute.xlu0 %1621
    %1623 = vrot.lane.b32.xlu0 %v1570, 112
    %v1624 = vpop.permute.xlu0 %1623
    %1625 = vrot.lane.b32.xlu0 %v1571, 112
    %v1626 = vpop.permute.xlu0 %1625
    %1627 = vrot.lane.b32.xlu0 %v1572, 112
    %v1628 = vpop.permute.xlu0 %1627
    %v1629 = vsel %vm755, %v1620, %v1622
    %v1630 = vsel %vm755, %v1622, %v1624
    %v1631 = vsel %vm755, %v1624, %v1626
    %v1632 = vsel %vm755, %v1626, %v1628
    %1637 = vrot.lane.b32.xlu0 %v1568, 111
    %v1638 = vpop.permute.xlu0 %1637
    %1639 = vrot.lane.b32.xlu0 %v1569, 111
    %v1640 = vpop.permute.xlu0 %1639
    %1641 = vrot.lane.b32.xlu0 %v1570, 111
    %v1642 = vpop.permute.xlu0 %1641
    %1643 = vrot.lane.b32.xlu0 %v1571, 111
    %v1644 = vpop.permute.xlu0 %1643
    %1645 = vrot.lane.b32.xlu0 %v1572, 111
    %v1646 = vpop.permute.xlu0 %1645
    %v1647 = vsel %vm774, %v1638, %v1640
    %v1648 = vsel %vm774, %v1640, %v1642
    %v1649 = vsel %vm774, %v1642, %v1644
    %v1650 = vsel %vm774, %v1644, %v1646
    %1655 = vrot.lane.b32.xlu0 %v1568, 110
    %v1656 = vpop.permute.xlu0 %1655
    %1657 = vrot.lane.b32.xlu0 %v1569, 110
    %v1658 = vpop.permute.xlu0 %1657
    %1659 = vrot.lane.b32.xlu0 %v1570, 110
    %v1660 = vpop.permute.xlu0 %1659
    %1661 = vrot.lane.b32.xlu0 %v1571, 110
    %v1662 = vpop.permute.xlu0 %1661
    %1663 = vrot.lane.b32.xlu0 %v1572, 110
    %v1664 = vpop.permute.xlu0 %1663
    %v1665 = vsel %vm793, %v1656, %v1658
    %v1666 = vsel %vm793, %v1658, %v1660
    %v1667 = vsel %vm793, %v1660, %v1662
    %v1668 = vsel %vm793, %v1662, %v1664
    %1673 = vrot.lane.b32.xlu0 %v1568, 96
    %v1674 = vpop.permute.xlu0 %1673
    %1675 = vrot.lane.b32.xlu0 %v1569, 96
    %v1676 = vpop.permute.xlu0 %1675
    %1677 = vrot.lane.b32.xlu0 %v1570, 96
    %v1678 = vpop.permute.xlu0 %1677
    %1679 = vrot.lane.b32.xlu0 %v1571, 96
    %v1680 = vpop.permute.xlu0 %1679
    %1681 = vrot.lane.b32.xlu0 %v1572, 96
    %v1682 = vpop.permute.xlu0 %1681
    %v1683 = vsel %vm812, %v1674, %v1676
    %v1684 = vsel %vm812, %v1676, %v1678
    %v1685 = vsel %vm812, %v1678, %v1680
    %v1686 = vsel %vm812, %v1680, %v1682
    %1691 = vrot.lane.b32.xlu0 %v1568, 95
    %v1692 = vpop.permute.xlu0 %1691
    %1693 = vrot.lane.b32.xlu0 %v1569, 95
    %v1694 = vpop.permute.xlu0 %1693
    %1695 = vrot.lane.b32.xlu0 %v1570, 95
    %v1696 = vpop.permute.xlu0 %1695
    %1697 = vrot.lane.b32.xlu0 %v1571, 95
    %v1698 = vpop.permute.xlu0 %1697
    %1699 = vrot.lane.b32.xlu0 %v1572, 95
    %v1700 = vpop.permute.xlu0 %1699
    %v1701 = vsel %vm831, %v1692, %v1694
    %v1702 = vsel %vm831, %v1694, %v1696
    %v1703 = vsel %vm831, %v1696, %v1698
    %v1704 = vsel %vm831, %v1698, %v1700
    %1714 = vrot.lane.b32.xlu0 %v1573, 94
    %v1715 = vpop.permute.xlu0 %1714
    %1716 = vrot.lane.b32.xlu0 %v1574, 94
    %v1717 = vpop.permute.xlu0 %1716
    %1718 = vrot.lane.b32.xlu0 %v1575, 94
    %v1719 = vpop.permute.xlu0 %1718
    %1720 = vrot.lane.b32.xlu0 %v1576, 94
    %v1721 = vpop.permute.xlu0 %1720
    %1722 = vrot.lane.b32.xlu0 %v1577, 94
    %v1723 = vpop.permute.xlu0 %1722
    %v1724 = vsel %vm855, %v1715, %v1717
    %v1725 = vsel %vm855, %v1717, %v1719
    %v1726 = vsel %vm855, %v1719, %v1721
    %v1727 = vsel %vm855, %v1721, %v1723
    %v1732 = vsel %vm310, %v1568, %v1593
    %v1733 = vsel %vm310, %v1569, %v1594
    %v1734 = vsel %vm310, %v1570, %v1595
    %v1735 = vsel %vm310, %v1571, %v1596
    %v1736 = vsel %vm388, %v1732, %v1611
    %v1737 = vsel %vm388, %v1733, %v1612
    %v1738 = vsel %vm388, %v1734, %v1613
    %v1739 = vsel %vm388, %v1735, %v1614
    %v1740 = vsel %vm394, %v1736, %v1629
    %v1741 = vsel %vm394, %v1737, %v1630
    %v1742 = vsel %vm394, %v1738, %v1631
    %v1743 = vsel %vm394, %v1739, %v1632
    %v1744 = vsel %vm400, %v1740, %v1647
    %v1745 = vsel %vm400, %v1741, %v1648
    %v1746 = vsel %vm400, %v1742, %v1649
    %v1747 = vsel %vm400, %v1743, %v1650
    %v1748 = vsel %vm406, %v1744, %v1665
    %v1749 = vsel %vm406, %v1745, %v1666
    %v1750 = vsel %vm406, %v1746, %v1667
    %v1751 = vsel %vm406, %v1747, %v1668
    %v1752 = vsel %vm884, %v1748, %v1683
    %v1753 = vsel %vm884, %v1749, %v1684
    %v1754 = vsel %vm884, %v1750, %v1685
    %v1755 = vsel %vm884, %v1751, %v1686
    %v1756 = vsel %vm889, %v1752, %v1701
    %v1757 = vsel %vm889, %v1753, %v1702
    %v1758 = vsel %vm889, %v1754, %v1703
    %v1759 = vsel %vm889, %v1755, %v1704
    %v1760 = vmul.f32 %v1756, %v45
    %v1761 = vmul.f32 %v1757, %v46
    %v1762 = vmul.f32 %v1758, %v47
    %v1763 = vmul.f32 %v1759, %v48
    %v1764 = vmul.f32 %v1724, %v49
    %v1765 = vmul.f32 %v1725, %v50
    %v1766 = vmul.f32 %v1726, %v51
    %v1767 = vmul.f32 %v1727, %v52
    %v1768 = vsel %vm310, %v1764, 0.0
    %v1769 = vadd.f32 %v1760, %v1768
    %v1770 = vrot.slane %v1769, 4
    %v1771 = vadd.f32 %v1769, %v1770
    %v1772 = vrot.slane %v1771, 2
    %v1773 = vadd.f32 %v1771, %v1772
    %v1774 = vrot.slane %v1773, 1
    %v1775 = vadd.f32 %v1773, %v1774
    %v1776 = vsel %vm310, %v1765, 0.0
    %v1777 = vadd.f32 %v1761, %v1776
    %v1778 = vrot.slane %v1777, 4
    %v1779 = vadd.f32 %v1777, %v1778
    %v1780 = vrot.slane %v1779, 2
    %v1781 = vadd.f32 %v1779, %v1780
    %v1782 = vrot.slane %v1781, 1
    %v1783 = vadd.f32 %v1781, %v1782
    %v1784 = vsel %vm310, %v1766, 0.0
    %v1785 = vadd.f32 %v1762, %v1784
    %v1786 = vrot.slane %v1785, 4
    %v1787 = vadd.f32 %v1785, %v1786
    %v1788 = vrot.slane %v1787, 2
    %v1789 = vadd.f32 %v1787, %v1788
    %v1790 = vrot.slane %v1789, 1
    %v1791 = vadd.f32 %v1789, %v1790
    %v1792 = vsel %vm310, %v1767, 0.0
    %v1793 = vadd.f32 %v1763, %v1792
    %v1794 = vrot.slane %v1793, 4
    %v1795 = vadd.f32 %v1793, %v1794
    %v1796 = vrot.slane %v1795, 2
    %v1797 = vadd.f32 %v1795, %v1796
    %v1798 = vrot.slane %v1797, 1
    %v1799 = vadd.f32 %v1797, %v1798
    %v1800 = vsub.f32 0.0, %v1775
    %v1801 = vsub.f32 0.0, %v1783
    %v1802 = vsub.f32 0.0, %v1791
    %v1803 = vsub.f32 0.0, %v1799
    %v1804 = vmul.f32 %v1800, 1.442695
    %v1805 = vpow.pop %v1804
    %v1806 = vmul.f32 %v1801, 1.442695
    %v1807 = vpow.pop %v1806
    %v1808 = vmul.f32 %v1802, 1.442695
    %v1809 = vpow.pop %v1808
    %v1810 = vmul.f32 %v1803, 1.442695
    %v1811 = vpow.pop %v1810
    %v1812 = vadd.f32 %v1805, 1.0
    %v1813 = vadd.f32 %v1807, 1.0
    %v1814 = vadd.f32 %v1809, 1.0
    %v1815 = vadd.f32 %v1811, 1.0
    %v1816 = vrcp.pop %v1812
    %v1817 = vmul.f32 1.0, %v1816
    %v1818 = vrcp.pop %v1813
    %v1819 = vmul.f32 1.0, %v1818
    %v1820 = vrcp.pop %v1814
    %v1821 = vmul.f32 1.0, %v1820
    %v1822 = vrcp.pop %v1815
    %v1823 = vmul.f32 1.0, %v1822
    %v1824 = vmul.f32 %v1155, %v1817
    %v1825 = vmul.f32 %v1156, %v1819
    %v1826 = vmul.f32 %v1157, %v1821
    %v1827 = vmul.f32 %v1158, %v1823
    %v1828 = vmul.f32 %v1159, %v1817
    %v1829 = vmul.f32 %v1160, %v1819
    %v1830 = vmul.f32 %v1161, %v1821
    %v1831 = vmul.f32 %v1162, %v1823
    %v1832 = vmul.f32 %v1163, %v1817
    %v1833 = vmul.f32 %v1164, %v1819
    %v1834 = vmul.f32 %v1165, %v1821
    %v1835 = vmul.f32 %v1166, %v1823
    %v1836 = vmul.f32 %v1167, %v1817
    %v1837 = vmul.f32 %v1168, %v1819
    %v1838 = vmul.f32 %v1169, %v1821
    %v1839 = vmul.f32 %v1170, %v1823
    %s1840 = scalar_lea.vmem [#allocation5], 128
    %1841 = vst [vmem:[%s1840] sm:$0xff] %v1824
    %1842 = vst [vmem:[%s1840 + $0x8] sm:$0xff] %v1825
    %1843 = vst [vmem:[%s1840 + $0x10] sm:$0xff] %v1826
    %1844 = vst [vmem:[%s1840 + $0x18] sm:$0xff] %v1827
    %1845 = vst [vmem:[%s1840 + $0x20] sm:$0xff] %v1828
    %1846 = vst [vmem:[%s1840 + $0x28] sm:$0xff] %v1829
    %1847 = vst [vmem:[%s1840 + $0x30] sm:$0xff] %v1830
    %1848 = vst [vmem:[%s1840 + $0x38] sm:$0xff] %v1831
    %1849 = vst [vmem:[%s1840 + $0x40] sm:$0xff] %v1832
    %1850 = vst [vmem:[%s1840 + $0x48] sm:$0xff] %v1833
    %1851 = vst [vmem:[%s1840 + $0x50] sm:$0xff] %v1834
    %1852 = vst [vmem:[%s1840 + $0x58] sm:$0xff] %v1835
    %1853 = vst [vmem:[%s1840 + $0x60] sm:$0xff] %v1836
    %1854 = vst [vmem:[%s1840 + $0x68] sm:$0xff] %v1837
    %1855 = vst [vmem:[%s1840 + $0x70] sm:$0xff] %v1838
    %1856 = vst [vmem:[%s1840 + $0x78] sm:$0xff] %v1839
    // Predicated region
    $region26: #{tpu_custom_call.1} parent=1 // pred_check
      _
    $region27: #{tpu_custom_call.1} parent=1 // pred_check_branch
      %1858 = sbr.rel (0) target = $region29
    $region28: #{tpu_custom_call.1} parent=1 // pred_region
      %s1860 = ssub.s32 4096, 4096
      %1861 = vsyncadd [#allocation4], %s1860
      %s1862 = sshll.u32 [#allocation5], 4
      %s1863 = int_to_ptr.vmem [resolvable:$true] %s1862
      %1868 = dma.vmem_to_hbm [thread:$0]  %s1863, 4096, %s5, [#allocation4], 512, 512, 32
    $region29: #{tpu_custom_call.1} parent=1 // pred_fallthru
      _
    // Predicated region
    $region30: #{tpu_custom_call.1} parent=1 // pred_check
      _
    $region31: #{tpu_custom_call.1} parent=1 // pred_check_branch
      %1870 = sbr.rel (0) target = $region33
    $region32: #{tpu_custom_call.1} parent=1 // pred_region
      %1871 = dma.done [#allocation4], 4096
    $region33: #{tpu_custom_call.1} parent=1 // pred_fallthru
      _
    %1872 = vsyncpa [#allocation3], 1
    %1873 = vsyncpa [#allocation4], 1

</llo_original>
